<compile_context>
chip_gen: v7x
topology: tpu7x:2x2x1
jax: 0.10.0
libtpu: 0.0.40
codegen_flags: <defaults>
</compile_context>

<pallas_src>
import functools

import jax
import jax.numpy as jnp
from jax.experimental import pallas as pl
from jax.experimental.pallas import tpu as pltpu

_NEG_BIG = -1e30  # large-negative bias for padded class columns (log_softmax-safe)


def _round_up(x, m):
    return (x + m - 1) // m * m


def nlgat_kernel(x_ref, wproj_ref, w1_ref, b1_ref, w2_ref, b2_ref,
                 w3_ref, b3_ref, o_ref, acc_ref, *, mode, feat):
    """Grid = (B, N_tiles).  acc_ref is an (8, feat) running-max accumulator."""
    n = pl.program_id(1)

    # Init the running max at the first points-tile of every batch element.
    @pl.when(n == 0)
    def _init():
        acc_ref[...] = jnp.full_like(acc_ref, -jnp.inf)

    xt = x_ref[0]                                              # (Tn, cin_p) bf16

    # Fused GSN|GRN projection: one wide bf16 MXU matmul, f32 accumulation.
    proj = jnp.dot(xt, wproj_ref[...], preferred_element_type=jnp.float32)
    if mode == "both":
        # Lane-aligned split at column `feat` (multiple of 128) -> cheap.
        xg = proj[:, :feat] * proj[:, feat:]
    else:  # "GSN" or "GRN": wproj holds the single corresponding weight.
        xg = proj

    # Per-tile reduction Tn -> 8 rows: pure VPU vmax (no XLU, no masked store).
    tn = xg.shape[0]
    tile_max = jnp.max(xg.reshape(tn // 8, 8, feat), axis=0)   # (8, feat)
    acc_ref[...] = jnp.maximum(acc_ref[...], tile_max)

    # FC head + log_softmax only once, on the last points-tile.
    @pl.when(n == pl.num_programs(1) - 1)
    def _finalize():
        pooled = jnp.max(acc_ref[...], axis=0, keepdims=True)  # (1, feat), one XLU reduce
        h1 = jnp.dot(pooled, w1_ref[...],
                     preferred_element_type=jnp.float32) + b1_ref[...]      # (1, 512)
        h2 = jnp.dot(h1, w2_ref[...],
                     preferred_element_type=jnp.float32) + b2_ref[...]      # (1, 256)
        logits = jnp.dot(h2, w3_ref[...],
                         preferred_element_type=jnp.float32) + b3_ref[...]  # (1, Cp)
        m = jnp.max(logits, axis=-1, keepdims=True)
        z = logits - m
        lse = jnp.log(jnp.sum(jnp.exp(z), axis=-1, keepdims=True))
        o_ref[0] = z - lse                                     # (1, Cp)


def nlgat_forward(x, params, mode="both", block_n=1024):
    """Full NLGAT.forward.  x: (B, N, C_in) in 'BNC' format. Returns (B, C)."""
    x = jnp.asarray(x, jnp.float32)
    B, N, c_in = x.shape
    feat = params["w_gsn"].shape[1]            # 1024
    num_classes = params["w3"].shape[1]

    # --- pad input-channel dim to a multiple of 8 (zero padding is matmul-neutral)
    cin_p = max(8, _round_up(c_in, 8))
    if cin_p != c_in:
        x = jnp.pad(x, ((0, 0), (0, 0), (0, cin_p - c_in)))
        w_gsn = jnp.pad(params["w_gsn"], ((0, cin_p - c_in), (0, 0)))
        w_grn = jnp.pad(params["w_grn"], ((0, cin_p - c_in), (0, 0)))
    else:
        w_gsn, w_grn = params["w_gsn"], params["w_grn"]

    # --- fuse the two projection weights into one wide bf16 matmul operand
    if mode == "both":
        w_proj = jnp.concatenate([w_gsn, w_grn], axis=1).astype(jnp.bfloat16)
    elif mode == "GSN":
        w_proj = w_gsn.astype(jnp.bfloat16)
    else:  # "GRN"
        w_proj = w_grn.astype(jnp.bfloat16)
    wcols = w_proj.shape[1]

    # --- stream x in bf16 (halves HBM traffic + vreg packing for the MXU operand)
    x = x.astype(jnp.bfloat16)

    # --- pick the points tile (multiple of 16 for bf16 sublane packing) and pad
    #     the points axis by replicating a REAL row so the running max is unchanged.
    tn = _round_up(max(1, min(block_n, N)), 16)
    n_pad = _round_up(N, tn)
    if n_pad != N:
        fill = jnp.broadcast_to(x[:, :1, :], (B, n_pad - N, cin_p))
        x = jnp.concatenate([x, fill], axis=1)

    # --- pad class dim to 128 lanes; padded bias -> -1e30 so log_softmax ignores it
    cp = max(128, _round_up(num_classes, 128))
    w3 = jnp.pad(params["w3"], ((0, 0), (0, cp - num_classes)))
    b3 = jnp.pad(params["b3"], ((0, 0), (0, cp - num_classes)),
                 constant_values=_NEG_BIG)

    resident = pl.Buffered(1)   # weights/biases: DMA'd once, no double buffer
    grid = (B, n_pad // tn)
    grid_spec = pltpu.PrefetchScalarGridSpec(
        num_scalar_prefetch=0,
        grid=grid,
        in_specs=[
            # streamed input: one (Tn, cin_p) points-tile per step (double-buffered)
            pl.BlockSpec((1, tn, cin_p), lambda b, n: (b, n, 0)),
            # resident weights / biases: constant index maps, single-buffered
            pl.BlockSpec((cin_p, wcols), lambda b, n: (0, 0), pipeline_mode=resident),
            pl.BlockSpec((feat, 512), lambda b, n: (0, 0), pipeline_mode=resident),
            pl.BlockSpec((1, 512), lambda b, n: (0, 0), pipeline_mode=resident),
            pl.BlockSpec((512, 256), lambda b, n: (0, 0), pipeline_mode=resident),
            pl.BlockSpec((1, 256), lambda b, n: (0, 0), pipeline_mode=resident),
            pl.BlockSpec((256, cp), lambda b, n: (0, 0), pipeline_mode=resident),
            pl.BlockSpec((1, cp), lambda b, n: (0, 0), pipeline_mode=resident),
        ],
        out_specs=pl.BlockSpec((1, 1, cp), lambda b, n: (b, 0, 0)),
        scratch_shapes=[pltpu.VMEM((8, feat), jnp.float32)],
    )

    out = pl.pallas_call(
        functools.partial(nlgat_kernel, mode=mode, feat=feat),
        out_shape=jax.ShapeDtypeStruct((B, 1, cp), jnp.float32),
        grid_spec=grid_spec,
        compiler_params=pltpu.CompilerParams(
            # batch axis shards across TensorCores (v7x megacore); points axis is
            # the running-max reduction -> "arbitrary" and last.
            dimension_semantics=("parallel", "arbitrary"),
            # 48 MiB: enough for Tn=1024 f32 intermediates, still within v7x's
            # 64 MiB VMEM.  v5e/v6e (128 MiB) can use block_n=2048 as well.
            vmem_limit_bytes=48 * 1024 * 1024,
        ),
    )(x, w_proj, params["w1"], params["b1"],
      params["w2"], params["b2"], w3, b3)

    return out.reshape(B, cp)[:, :num_classes]


def nlgat_reference(x, params, mode="both"):
    """Pure-JAX reference.  Projection operands cast to bf16 to match the kernel's
    (intentional, review-requested) MXU precision; accumulation stays f32."""
    xb = x.astype(jnp.bfloat16)
    a_dp = jnp.einsum("bnc,cf->bnf", xb, params["w_gsn"].astype(jnp.bfloat16),
                      preferred_element_type=jnp.float32)
    x_hat_g = jnp.einsum("bnc,cf->bnf", xb, params["w_grn"].astype(jnp.bfloat16),
                         preferred_element_type=jnp.float32)
    if mode == "both":
        xg = a_dp * x_hat_g
    elif mode == "GSN":
        xg = a_dp
    else:
        xg = x_hat_g
    pooled = jnp.max(xg, axis=1)                      # MaxPool1d over all points
    logits = ((pooled @ params["w1"] + params["b1"]) @ params["w2"]
              + params["b2"]) @ params["w3"] + params["b3"]
    return jax.nn.log_softmax(logits, axis=1)


def init_params(key, c_in, num_classes):
    ks = jax.random.split(key, 8)

    def lin(k, fan_in, fan_out):
        scale = 1.0 / jnp.sqrt(jnp.float32(fan_in))
        return jax.random.uniform(k, (fan_in, fan_out), jnp.float32, -scale, scale)

    return {
        "w_gsn": lin(ks[0], c_in, 1024),
        "w_grn": lin(ks[1], c_in, 1024),
        "w1": lin(ks[2], 1024, 512),
        "b1": jax.random.normal(ks[3], (1, 512), jnp.float32) * 0.01,
        "w2": lin(ks[4], 512, 256),
        "b2": jax.random.normal(ks[5], (1, 256), jnp.float32) * 0.01,
        "w3": lin(ks[6], 256, num_classes),
        "b3": jax.random.normal(ks[7], (1, num_classes), jnp.float32) * 0.01,
    }


if __name__ == "__main__":
    B, C_IN, NUM_CLASSES = 2, 3, 40   # batch, xyz channels, classes

    key = jax.random.PRNGKey(0)
    k_x1, k_x2, k_p = jax.random.split(key, 3)
    params = init_params(k_p, C_IN, NUM_CLASSES)

    # Case 1: tiny point cloud, single points-tile.
    x1 = jax.random.normal(k_x1, (B, 8, C_IN), jnp.float32)
    fwd1 = jax.jit(functools.partial(nlgat_forward, mode="both"))
    out1 = jax.block_until_ready(fwd1(x1, params))
    ref1 = nlgat_reference(x1, params, mode="both")
    assert out1.shape == (B, NUM_CLASSES)
    assert jnp.allclose(out1, ref1, atol=1e-3, rtol=1e-3), "mismatch (case 1)"

    # Case 2: non-divisible N with a small forced tile -> exercises the tiled
    # running-max accumulator, padding and finalize-on-last-step path.
    x2 = jax.random.normal(k_x2, (B, 40, C_IN), jnp.float32)
    fwd2 = jax.jit(functools.partial(nlgat_forward, mode="both", block_n=16))
    out2 = jax.block_until_ready(fwd2(x2, params))
    ref2 = nlgat_reference(x2, params, mode="both")
    assert out2.shape == (B, NUM_CLASSES)
    assert jnp.allclose(out2, ref2, atol=1e-3, rtol=1e-3), "mismatch (case 2)"

    print("KERNEL_OK")
</pallas_src>

<mosaic_0001>
module attributes {stable_mosaic.version = 11 : i64} {
  func.func @nlgat_kernel(%arg0: i32, %arg1: i32, %arg2: memref<1x16x8xbf16, #tpu.memory_space<vmem>>, %arg3: memref<8x2048xbf16, #tpu.memory_space<vmem>>, %arg4: memref<1024x512xf32, #tpu.memory_space<vmem>>, %arg5: memref<1x512xf32, #tpu.memory_space<vmem>>, %arg6: memref<512x256xf32, #tpu.memory_space<vmem>>, %arg7: memref<1x256xf32, #tpu.memory_space<vmem>>, %arg8: memref<256x128xf32, #tpu.memory_space<vmem>>, %arg9: memref<1x128xf32, #tpu.memory_space<vmem>>, %arg10: memref<1x1x128xf32, #tpu.memory_space<vmem>>, %arg11: memref<8x1024xf32, #tpu.memory_space<vmem>>) attributes {dimension_semantics = [#tpu.dimension_semantics<parallel>, #tpu.dimension_semantics<arbitrary>], iteration_bounds = array<i64: 2, 1>, scalar_prefetch = 0 : i64, scratch_operands = 1 : i64, tpu.core_type = #tpu.core_type<tc>, window_params = [{transform_indices = @transform_0, window_bounds = array<i64: 1, 16, 8>}, {pipeline_mode = #tpu.pipeline_mode<synchronous>, transform_indices = @transform_1, window_bounds = array<i64: 8, 2048>}, {pipeline_mode = #tpu.pipeline_mode<synchronous>, transform_indices = @transform_2, window_bounds = array<i64: 1024, 512>}, {pipeline_mode = #tpu.pipeline_mode<synchronous>, transform_indices = @transform_3, window_bounds = array<i64: 1, 512>}, {pipeline_mode = #tpu.pipeline_mode<synchronous>, transform_indices = @transform_4, window_bounds = array<i64: 512, 256>}, {pipeline_mode = #tpu.pipeline_mode<synchronous>, transform_indices = @transform_5, window_bounds = array<i64: 1, 256>}, {pipeline_mode = #tpu.pipeline_mode<synchronous>, transform_indices = @transform_6, window_bounds = array<i64: 256, 128>}, {pipeline_mode = #tpu.pipeline_mode<synchronous>, transform_indices = @transform_7, window_bounds = array<i64: 1, 128>}, {transform_indices = @transform_8, window_bounds = array<i64: 1, 1, 128>}]} {
    %c0_i32 = arith.constant 0 : i32
    %0 = arith.cmpi eq, %arg1, %c0_i32 : i32
    %1 = arith.extui %0 : i1 to i32
    %c0_i32_0 = arith.constant 0 : i32
    %2 = arith.cmpi ne, %1, %c0_i32_0 : i32
    scf.if %2 {
      %cst_12 = arith.constant 0xFF800000 : f32
      %18 = vector.broadcast %cst_12 : f32 to vector<8x1024xf32>
      %c0_13 = arith.constant 0 : index
      %c0_14 = arith.constant 0 : index
      %19 = vector.load %arg11[%c0_13, %c0_14] : memref<8x1024xf32, #tpu.memory_space<vmem>>, vector<8x1024xf32>
      tpu.vector_store %arg11[%c0_13, %c0_14], %18 {strides = array<i32>} : memref<8x1024xf32, #tpu.memory_space<vmem>>, vector<8x1024xf32>,
    } else {
    }
    %c0 = arith.constant 0 : index
    %c0_1 = arith.constant 0 : index
    %c0_2 = arith.constant 0 : index
    %3 = vector.load %arg2[%c0, %c0_1, %c0_2] : memref<1x16x8xbf16, #tpu.memory_space<vmem>>, vector<1x16x8xbf16>
    %4 = vector.shape_cast %3 : vector<1x16x8xbf16> to vector<16x8xbf16>
    %c0_3 = arith.constant 0 : index
    %c0_4 = arith.constant 0 : index
    %5 = vector.load %arg3[%c0_3, %c0_4] : memref<8x2048xbf16, #tpu.memory_space<vmem>>, vector<8x2048xbf16>
    %cst = arith.constant dense<0.000000e+00> : vector<16x2048xf32>
    %6 = tpu.matmul %4, %5, %cst {dimension_numbers = #tpu.dot_dimension_numbers<[1], [0], [0], [1], [0, 0, 1, 1], [], []>} : vector<16x8xbf16>, vector<8x2048xbf16>, vector<16x2048xf32> -> vector<16x2048xf32>
    %7 = vector.extract_strided_slice %6 {offsets = [0, 0], sizes = [16, 1024], strides = [1, 1]} : vector<16x2048xf32> to vector<16x1024xf32>
    %8 = vector.extract_strided_slice %6 {offsets = [0, 1024], sizes = [16, 1024], strides = [1, 1]} : vector<16x2048xf32> to vector<16x1024xf32>
    %9 = arith.mulf %7, %8 : vector<16x1024xf32>
    %10 = vector.shape_cast %9 : vector<16x1024xf32> to vector<2x8x1024xf32>
    %cst_5 = arith.constant dense<0xFF800000> : vector<8x1024xf32>
    %11 = vector.multi_reduction <maximumf>, %10, %cst_5 [0] : vector<2x8x1024xf32> to vector<8x1024xf32>
    %c0_6 = arith.constant 0 : index
    %c0_7 = arith.constant 0 : index
    %12 = vector.load %arg11[%c0_6, %c0_7] : memref<8x1024xf32, #tpu.memory_space<vmem>>, vector<8x1024xf32>
    %13 = arith.maximumf %12, %11 : vector<8x1024xf32>
    %c0_8 = arith.constant 0 : index
    %c0_9 = arith.constant 0 : index
    %14 = vector.load %arg11[%c0_8, %c0_9] : memref<8x1024xf32, #tpu.memory_space<vmem>>, vector<8x1024xf32>
    tpu.vector_store %arg11[%c0_8, %c0_9], %13 {strides = array<i32>} : memref<8x1024xf32, #tpu.memory_space<vmem>>, vector<8x1024xf32>,
    %c0_i32_10 = arith.constant 0 : i32
    %15 = arith.cmpi eq, %arg1, %c0_i32_10 : i32
    %16 = arith.extui %15 : i1 to i32
    %c0_i32_11 = arith.constant 0 : i32
    %17 = arith.cmpi ne, %16, %c0_i32_11 : i32
    scf.if %17 {
      %c0_12 = arith.constant 0 : index
      %c0_13 = arith.constant 0 : index
      %18 = vector.load %arg11[%c0_12, %c0_13] : memref<8x1024xf32, #tpu.memory_space<vmem>>, vector<8x1024xf32>
      %cst_14 = arith.constant dense<0xFF800000> : vector<1024xf32>
      %19 = vector.multi_reduction <maximumf>, %18, %cst_14 [0] : vector<8x1024xf32> to vector<1024xf32>
      %20 = vector.shape_cast %19 : vector<1024xf32> to vector<1x1024xf32>
      %c0_15 = arith.constant 0 : index
      %c0_16 = arith.constant 0 : index
      %21 = vector.load %arg4[%c0_15, %c0_16] : memref<1024x512xf32, #tpu.memory_space<vmem>>, vector<1024x512xf32>
      %cst_17 = arith.constant dense<0.000000e+00> : vector<1x512xf32>
      %22 = tpu.matmul %20, %21, %cst_17 {dimension_numbers = #tpu.dot_dimension_numbers<[1], [0], [0], [1], [0, 0, 1, 1], [], []>} : vector<1x1024xf32>, vector<1024x512xf32>, vector<1x512xf32> -> vector<1x512xf32>
      %c0_18 = arith.constant 0 : index
      %c0_19 = arith.constant 0 : index
      %23 = vector.load %arg5[%c0_18, %c0_19] : memref<1x512xf32, #tpu.memory_space<vmem>>, vector<1x512xf32>
      %24 = arith.addf %22, %23 : vector<1x512xf32>
      %c0_20 = arith.constant 0 : index
      %c0_21 = arith.constant 0 : index
      %25 = vector.load %arg6[%c0_20, %c0_21] : memref<512x256xf32, #tpu.memory_space<vmem>>, vector<512x256xf32>
      %cst_22 = arith.constant dense<0.000000e+00> : vector<1x256xf32>
      %26 = tpu.matmul %24, %25, %cst_22 {dimension_numbers = #tpu.dot_dimension_numbers<[1], [0], [0], [1], [0, 0, 1, 1], [], []>} : vector<1x512xf32>, vector<512x256xf32>, vector<1x256xf32> -> vector<1x256xf32>
      %c0_23 = arith.constant 0 : index
      %c0_24 = arith.constant 0 : index
      %27 = vector.load %arg7[%c0_23, %c0_24] : memref<1x256xf32, #tpu.memory_space<vmem>>, vector<1x256xf32>
      %28 = arith.addf %26, %27 : vector<1x256xf32>
      %c0_25 = arith.constant 0 : index
      %c0_26 = arith.constant 0 : index
      %29 = vector.load %arg8[%c0_25, %c0_26] : memref<256x128xf32, #tpu.memory_space<vmem>>, vector<256x128xf32>
      %cst_27 = arith.constant dense<0.000000e+00> : vector<1x128xf32>
      %30 = tpu.matmul %28, %29, %cst_27 {dimension_numbers = #tpu.dot_dimension_numbers<[1], [0], [0], [1], [0, 0, 1, 1], [], []>} : vector<1x256xf32>, vector<256x128xf32>, vector<1x128xf32> -> vector<1x128xf32>
      %c0_28 = arith.constant 0 : index
      %c0_29 = arith.constant 0 : index
      %31 = vector.load %arg9[%c0_28, %c0_29] : memref<1x128xf32, #tpu.memory_space<vmem>>, vector<1x128xf32>
      %32 = arith.addf %30, %31 : vector<1x128xf32>
      %cst_30 = arith.constant dense<0xFF800000> : vector<1xf32>
      %33 = vector.multi_reduction <maximumf>, %32, %cst_30 [1] : vector<1x128xf32> to vector<1xf32>
      %34 = vector.shape_cast %33 : vector<1xf32> to vector<1x1xf32>
      %35 = vector.broadcast %34 : vector<1x1xf32> to vector<1x128xf32>
      %36 = arith.subf %32, %35 : vector<1x128xf32>
      %37 = math.exp %36 : vector<1x128xf32>
      %cst_31 = arith.constant dense<0.000000e+00> : vector<1xf32>
      %38 = vector.multi_reduction <add>, %37, %cst_31 [1] : vector<1x128xf32> to vector<1xf32>
      %39 = vector.shape_cast %38 : vector<1xf32> to vector<1x1xf32>
      %40 = math.log %39 : vector<1x1xf32>
      %41 = vector.broadcast %40 : vector<1x1xf32> to vector<1x128xf32>
      %42 = arith.subf %36, %41 : vector<1x128xf32>
      %c0_32 = arith.constant 0 : index
      %c0_33 = arith.constant 0 : index
      %c0_34 = arith.constant 0 : index
      %43 = vector.load %arg10[%c0_32, %c0_33, %c0_34] : memref<1x1x128xf32, #tpu.memory_space<vmem>>, vector<1x1x128xf32>
      %44 = vector.shape_cast %43 : vector<1x1x128xf32> to vector<1x128xf32>
      %45 = vector.shape_cast %42 : vector<1x128xf32> to vector<1x1x128xf32>
      tpu.vector_store %arg10[%c0_32, %c0_33, %c0_34], %45 {strides = array<i32>} : memref<1x1x128xf32, #tpu.memory_space<vmem>>, vector<1x1x128xf32>,
    } else {
    }
    return
  }
  func.func @transform_0(%arg0: i32, %arg1: i32) -> (i32, i32, i32) {
    %c0_i32 = arith.constant 0 : i32
    %c0_i32_0 = arith.constant 0 : i32
    return %arg0, %arg1, %c0_i32 : i32, i32, i32
  }
  func.func @transform_1(%arg0: i32, %arg1: i32) -> (i32, i32) {
    %c0_i32 = arith.constant 0 : i32
    %c0_i32_0 = arith.constant 0 : i32
    %c0_i32_1 = arith.constant 0 : i32
    return %c0_i32, %c0_i32_0 : i32, i32
  }
  func.func @transform_2(%arg0: i32, %arg1: i32) -> (i32, i32) {
    %c0_i32 = arith.constant 0 : i32
    %c0_i32_0 = arith.constant 0 : i32
    %c0_i32_1 = arith.constant 0 : i32
    return %c0_i32, %c0_i32_0 : i32, i32
  }
  func.func @transform_3(%arg0: i32, %arg1: i32) -> (i32, i32) {
    %c0_i32 = arith.constant 0 : i32
    %c0_i32_0 = arith.constant 0 : i32
    %c0_i32_1 = arith.constant 0 : i32
    return %c0_i32, %c0_i32_0 : i32, i32
  }
  func.func @transform_4(%arg0: i32, %arg1: i32) -> (i32, i32) {
    %c0_i32 = arith.constant 0 : i32
    %c0_i32_0 = arith.constant 0 : i32
    %c0_i32_1 = arith.constant 0 : i32
    return %c0_i32, %c0_i32_0 : i32, i32
  }
  func.func @transform_5(%arg0: i32, %arg1: i32) -> (i32, i32) {
    %c0_i32 = arith.constant 0 : i32
    %c0_i32_0 = arith.constant 0 : i32
    %c0_i32_1 = arith.constant 0 : i32
    return %c0_i32, %c0_i32_0 : i32, i32
  }
  func.func @transform_6(%arg0: i32, %arg1: i32) -> (i32, i32) {
    %c0_i32 = arith.constant 0 : i32
    %c0_i32_0 = arith.constant 0 : i32
    %c0_i32_1 = arith.constant 0 : i32
    return %c0_i32, %c0_i32_0 : i32, i32
  }
  func.func @transform_7(%arg0: i32, %arg1: i32) -> (i32, i32) {
    %c0_i32 = arith.constant 0 : i32
    %c0_i32_0 = arith.constant 0 : i32
    %c0_i32_1 = arith.constant 0 : i32
    return %c0_i32, %c0_i32_0 : i32, i32
  }
  func.func @transform_8(%arg0: i32, %arg1: i32) -> (i32, i32, i32) {
    %c0_i32 = arith.constant 0 : i32
    %c0_i32_0 = arith.constant 0 : i32
    %c0_i32_1 = arith.constant 0 : i32
    return %arg0, %c0_i32, %c0_i32_0 : i32, i32, i32
  }
}

</mosaic_0001>

<llo_original>
// kernel: nlgat_forward.1
$region0: #{nlgat_forward.1}
  #allocation0 [shape = 'u32[]', space=smem, size = 0x4, offset = 0x4, fixed_abs, tag = 'smem constant byte address 0x4 - core index']
  #allocation1 [shape = 'u32[144,128]{1,0:T(1,128)}', space=vmem, size = 0x12000, scoped, tag = 'internal scratch']
  #allocation2 [shape = 'f32[8,1024]{1,0:T(8,128)}', space=vmem, size = 0x8000, scoped, tag = 'scratch operand']
  %s0 = inlined_call_operand.vmem [shape: bf16[2,16,8], index: 0, kind: input, shape index: {}]
  %s1 = inlined_call_operand.vmem [shape: bf16[8,2048], index: 1, kind: input, shape index: {}]
  %s2 = inlined_call_operand.hbm [shape: f32[1024,512], index: 2, kind: input, shape index: {}]
  %s3 = inlined_call_operand.hbm [shape: f32[1,512], index: 3, kind: input, shape index: {}]
  %s4 = inlined_call_operand.hbm [shape: f32[512,256], index: 4, kind: input, shape index: {}]
  %s5 = inlined_call_operand.hbm [shape: f32[1,256], index: 5, kind: input, shape index: {}]
  %s6 = inlined_call_operand.vmem [shape: f32[256,128], index: 6, kind: input, shape index: {}]
  %s7 = inlined_call_operand.vmem [shape: f32[1,128], index: 7, kind: input, shape index: {}]
  %s8 = inlined_call_operand.hbm [shape: f32[2,1,128], index: 8, kind: output, shape index: {}]
  %s9 = sld [smem:[#allocation0]]
  $region89: #{nlgat_forward.1} parent=0
    _
  %s11 = ssub.s32 1, %s9
  %s12 = scalar_select 0, %s11, %s9
  $region1: #{nlgat_forward.1} parent=0
    #allocation3 [shape = 'u8[2097152]{0}', space=vmem, size = 0x200000, scoped, tag = 'input window, operand 2, single buffered']
    #allocation4 [shape = 's32[2]{0}', space=sflag, size = 0x8, scoped, tag = 'scoped memory for nlgat_forward.1']
    #allocation5 [shape = 's32[2]{0}', space=sflag, size = 0x8, scoped, tag = 'scoped memory for nlgat_forward.1']
    #allocation6 [shape = 'u8[2048]{0}', space=vmem, size = 0x800, scoped, tag = 'input window, operand 3, single buffered']
    #allocation7 [shape = 's32[1]{0}', space=sflag, size = 0x4, scoped, tag = 'scoped memory for nlgat_forward.1']
    #allocation8 [shape = 'u8[524288]{0}', space=vmem, size = 0x80000, scoped, tag = 'input window, operand 4, single buffered']
    #allocation9 [shape = 'u8[1024]{0}', space=vmem, size = 0x400, scoped, tag = 'input window, operand 5, single buffered']
    #allocation10 [shape = 's32[1]{0}', space=sflag, size = 0x4, scoped, tag = 'scoped memory for nlgat_forward.1']
    #allocation11 [shape = 'u8[1024]{0}', space=vmem, size = 0x400, scoped, tag = 'output window, operand 0']
    %13 = vsyncpa [#allocation4], 0
    %14 = vsyncpa [#allocation7], 0
    %15 = vsyncpa [#allocation10], 0
    %16 = vsyncpa [#allocation5], 0
    %s17 = scalar_lea.sflag [#allocation5], 1
    %18 = vsyncpa %s17, 0
    loop: start=0, step=1, limit=4
    $region2: #{nlgat_forward.1} parent=1 // loop_pre_header
      _
    $region3: #{nlgat_forward.1} parent=1 // loop_header
      %s20 = sphi 0, %s24
      %p21 = scmp.ge.s32.totalorder %s20, 4
      %s27 = sphi 0, %s39
      %s28 = sphi 0, %s35
      %s29 = sphi 0, %s27
      %s30 = sphi 0, %s28
      %s31 = sphi 0, %s29
      %s32 = sphi 0, %s30
      %s44 = sphi 0, %s46
      %s47 = sphi 0, %s44
      %s48 = sphi 0, %s47
      %s64 = sphi 0, %s48
      %s68 = sphi 0, %s68
      %s70 = sphi 0, %s68
      %s71 = sphi 0, %s70
      %s85 = sphi 0, %s71
      %s89 = sphi 0, %s89
      %s91 = sphi 0, %s89
      %s92 = sphi 0, %s91
      %s106 = sphi 0, %s92
      %s110 = sphi 0, %s110
      %s112 = sphi 0, %s110
      %s113 = sphi 0, %s112
      %s127 = sphi 0, %s113
      %s131 = sphi 0, %s131
      %s133 = sphi 0, %s131
      %s134 = sphi 0, %s133
      %s148 = sphi 0, %s134
      %s152 = sphi 0, %s152
      %s154 = sphi 0, %s152
      %s155 = sphi 0, %s154
      %s169 = sphi 0, %s155
      %s173 = sphi 0, %s173
      %s175 = sphi 0, %s173
      %s176 = sphi 0, %s175
      %s190 = sphi 0, %s176
      %s194 = sphi 0, %s194
      %s196 = sphi 0, %s194
      %s197 = sphi 0, %s196
      %s211 = sphi 0, %s197
      %s217 = sphi 0, %s219
      %s220 = sphi 0, %s217
      %s221 = sphi 0, %s220
      %s237 = sphi 0, %s221
    $region4: #{nlgat_forward.1} parent=1 // loop_header_branch
      %23 = sbr.rel (%p21) target = $region8
    $region5: #{nlgat_forward.1} parent=1 // loop_body
      %s25 = ssub.s32 %s20, 1
      %s26 = ssub.s32 %s20, 2
      %s33 = sadd.s32 1, %s28
      %p34 = scmp.ge.s32.totalorder %s33, 1
      %s35 = scalar_select %p34, 0, %s33
      %s36 = sadd.s32 1, %s27
      %s37 = scalar_select %p34, %s36, %s27
      %p38 = scmp.ge.s32.totalorder %s37, 2
      %s39 = scalar_select %p38, 0, %s37
      %s40 = ssub.s32 %s27, %s39
      %s41 = ssub.s32 %s28, %s35
      %s42 = sor.u32 %s40, %s41
      %p43 = scmp.eq.s32.totalorder %s42, 0
      %s45 = sadd.s32 %s44, 1
      %s46 = scalar_select %p43, %s44, %s45
      %p49 = pneg %p43
      %p50 = scmp.eq.s32.totalorder %s20, 1
      %p51 = por %p49, %p50
      %p52 = scmp.ne.s32.totalorder %s44, %s47
      %p53 = scmp.eq.s32.totalorder %s20, 0
      %p54 = por %p52, %p53
      %p55 = scmp.ne.s32.totalorder %s44, %s47
      %p56 = scmp.eq.s32.totalorder %s25, 1
      %p57 = por %p55, %p56
      %p58 = scmp.ne.s32.totalorder %s47, %s48
      %p59 = scmp.eq.s32.totalorder %s25, 0
      %p60 = por %p58, %p59
      %p61 = scmp.ne.s32.totalorder %s47, %s48
      %p62 = scmp.eq.s32.totalorder %s26, 1
      %p63 = por %p61, %p62
      %p65 = scmp.ne.s32.totalorder %s48, %s64
      %p66 = scmp.eq.s32.totalorder %s26, 0
      %p67 = por %p65, %p66
      %s69 = sadd.s32 %s68, 1
      %p72 = scmp.eq.s32.totalorder %s20, 1
      %p73 = scmp.ne.s32.totalorder %s68, %s70
      %p74 = scmp.eq.s32.totalorder %s20, 0
      %p75 = por %p73, %p74
      %p76 = scmp.ne.s32.totalorder %s68, %s70
      %p77 = scmp.eq.s32.totalorder %s25, 1
      %p78 = por %p76, %p77
      %p79 = scmp.ne.s32.totalorder %s70, %s71
      %p80 = scmp.eq.s32.totalorder %s25, 0
      %p81 = por %p79, %p80
      %p82 = scmp.ne.s32.totalorder %s70, %s71
      %p83 = scmp.eq.s32.totalorder %s26, 1
      %p84 = por %p82, %p83
      %p86 = scmp.ne.s32.totalorder %s71, %s85
      %p87 = scmp.eq.s32.totalorder %s26, 0
      %p88 = por %p86, %p87
      %s90 = sadd.s32 %s89, 1
      %p93 = scmp.eq.s32.totalorder %s20, 1
      %p94 = scmp.ne.s32.totalorder %s89, %s91
      %p95 = scmp.eq.s32.totalorder %s20, 0
      %p96 = por %p94, %p95
      %p97 = scmp.ne.s32.totalorder %s89, %s91
      %p98 = scmp.eq.s32.totalorder %s25, 1
      %p99 = por %p97, %p98
      %p100 = scmp.ne.s32.totalorder %s91, %s92
      %p101 = scmp.eq.s32.totalorder %s25, 0
      %p102 = por %p100, %p101
      %p103 = scmp.ne.s32.totalorder %s91, %s92
      %p104 = scmp.eq.s32.totalorder %s26, 1
      %p105 = por %p103, %p104
      %p107 = scmp.ne.s32.totalorder %s92, %s106
      %p108 = scmp.eq.s32.totalorder %s26, 0
      %p109 = por %p107, %p108
      %s111 = sadd.s32 %s110, 1
      %p114 = scmp.eq.s32.totalorder %s20, 1
      %p115 = scmp.ne.s32.totalorder %s110, %s112
      %p116 = scmp.eq.s32.totalorder %s20, 0
      %p117 = por %p115, %p116
      %p118 = scmp.ne.s32.totalorder %s110, %s112
      %p119 = scmp.eq.s32.totalorder %s25, 1
      %p120 = por %p118, %p119
      %p121 = scmp.ne.s32.totalorder %s112, %s113
      %p122 = scmp.eq.s32.totalorder %s25, 0
      %p123 = por %p121, %p122
      %p124 = scmp.ne.s32.totalorder %s112, %s113
      %p125 = scmp.eq.s32.totalorder %s26, 1
      %p126 = por %p124, %p125
      %p128 = scmp.ne.s32.totalorder %s113, %s127
      %p129 = scmp.eq.s32.totalorder %s26, 0
      %p130 = por %p128, %p129
      %s132 = sadd.s32 %s131, 1
      %p135 = scmp.eq.s32.totalorder %s20, 1
      %p136 = scmp.ne.s32.totalorder %s131, %s133
      %p137 = scmp.eq.s32.totalorder %s20, 0
      %p138 = por %p136, %p137
      %p139 = scmp.ne.s32.totalorder %s131, %s133
      %p140 = scmp.eq.s32.totalorder %s25, 1
      %p141 = por %p139, %p140
      %p142 = scmp.ne.s32.totalorder %s133, %s134
      %p143 = scmp.eq.s32.totalorder %s25, 0
      %p144 = por %p142, %p143
      %p145 = scmp.ne.s32.totalorder %s133, %s134
      %p146 = scmp.eq.s32.totalorder %s26, 1
      %p147 = por %p145, %p146
      %p149 = scmp.ne.s32.totalorder %s134, %s148
      %p150 = scmp.eq.s32.totalorder %s26, 0
      %p151 = por %p149, %p150
      %s153 = sadd.s32 %s152, 1
      %p156 = scmp.eq.s32.totalorder %s20, 1
      %p157 = scmp.ne.s32.totalorder %s152, %s154
      %p158 = scmp.eq.s32.totalorder %s20, 0
      %p159 = por %p157, %p158
      %p160 = scmp.ne.s32.totalorder %s152, %s154
      %p161 = scmp.eq.s32.totalorder %s25, 1
      %p162 = por %p160, %p161
      %p163 = scmp.ne.s32.totalorder %s154, %s155
      %p164 = scmp.eq.s32.totalorder %s25, 0
      %p165 = por %p163, %p164
      %p166 = scmp.ne.s32.totalorder %s154, %s155
      %p167 = scmp.eq.s32.totalorder %s26, 1
      %p168 = por %p166, %p167
      %p170 = scmp.ne.s32.totalorder %s155, %s169
      %p171 = scmp.eq.s32.totalorder %s26, 0
      %p172 = por %p170, %p171
      %s174 = sadd.s32 %s173, 1
      %p177 = scmp.eq.s32.totalorder %s20, 1
      %p178 = scmp.ne.s32.totalorder %s173, %s175
      %p179 = scmp.eq.s32.totalorder %s20, 0
      %p180 = por %p178, %p179
      %p181 = scmp.ne.s32.totalorder %s173, %s175
      %p182 = scmp.eq.s32.totalorder %s25, 1
      %p183 = por %p181, %p182
      %p184 = scmp.ne.s32.totalorder %s175, %s176
      %p185 = scmp.eq.s32.totalorder %s25, 0
      %p186 = por %p184, %p185
      %p187 = scmp.ne.s32.totalorder %s175, %s176
      %p188 = scmp.eq.s32.totalorder %s26, 1
      %p189 = por %p187, %p188
      %p191 = scmp.ne.s32.totalorder %s176, %s190
      %p192 = scmp.eq.s32.totalorder %s26, 0
      %p193 = por %p191, %p192
      %s195 = sadd.s32 %s194, 1
      %p198 = scmp.eq.s32.totalorder %s20, 1
      %p199 = scmp.ne.s32.totalorder %s194, %s196
      %p200 = scmp.eq.s32.totalorder %s20, 0
      %p201 = por %p199, %p200
      %p202 = scmp.ne.s32.totalorder %s194, %s196
      %p203 = scmp.eq.s32.totalorder %s25, 1
      %p204 = por %p202, %p203
      %p205 = scmp.ne.s32.totalorder %s196, %s197
      %p206 = scmp.eq.s32.totalorder %s25, 0
      %p207 = por %p205, %p206
      %p208 = scmp.ne.s32.totalorder %s196, %s197
      %p209 = scmp.eq.s32.totalorder %s26, 1
      %p210 = por %p208, %p209
      %p212 = scmp.ne.s32.totalorder %s197, %s211
      %p213 = scmp.eq.s32.totalorder %s26, 0
      %p214 = por %p212, %p213
      %s215 = ssub.s32 %s27, %s39
      %p216 = scmp.eq.s32.totalorder %s215, 0
      %s218 = sadd.s32 %s217, 1
      %s219 = scalar_select %p216, %s217, %s218
      %p222 = pneg %p216
      %p223 = scmp.eq.s32.totalorder %s20, 1
      %p224 = por %p222, %p223
      %p225 = scmp.ne.s32.totalorder %s217, %s220
      %p226 = scmp.eq.s32.totalorder %s20, 0
      %p227 = por %p225, %p226
      %p228 = scmp.ne.s32.totalorder %s217, %s220
      %p229 = scmp.eq.s32.totalorder %s25, 1
      %p230 = por %p228, %p229
      %p231 = scmp.ne.s32.totalorder %s220, %s221
      %p232 = scmp.eq.s32.totalorder %s25, 0
      %p233 = por %p231, %p232
      %p234 = scmp.ne.s32.totalorder %s220, %s221
      %p235 = scmp.eq.s32.totalorder %s26, 1
      %p236 = por %p234, %p235
      %p238 = scmp.ne.s32.totalorder %s221, %s237
      %p239 = scmp.eq.s32.totalorder %s26, 0
      %p240 = por %p238, %p239
      %p241 = scmp.le.s32.totalorder 1, %s20
      %p242 = scmp.lt.s32.totalorder %s20, 3
      %p243 = pnand %p241, %p242
      %p244 = pneg %p243
      // Predicated region
      $region9: #{nlgat_forward.1} parent=5 // pred_check
        _
      $region10: #{nlgat_forward.1} parent=5 // pred_check_branch
        %246 = sbr.rel (%p243) target = $region12
      $region11: #{nlgat_forward.1} parent=5 // pred_region
        %s247 = ssub.s32 %s20, 1
        // Predicated region
        $region13: #{nlgat_forward.1} parent=11 // pred_check
          %p248 = pneg %p81
        $region14: #{nlgat_forward.1} parent=11 // pred_check_branch
          %250 = sbr.rel (%p248) target = $region16
        $region15: #{nlgat_forward.1} parent=11 // pred_region
          _
        $region16: #{nlgat_forward.1} parent=11 // pred_fallthru
          _
        // Predicated region
        $region17: #{nlgat_forward.1} parent=11 // pred_check
          %p251 = pneg %p102
        $region18: #{nlgat_forward.1} parent=11 // pred_check_branch
          %253 = sbr.rel (%p251) target = $region20
        $region19: #{nlgat_forward.1} parent=11 // pred_region
          %s255 = ssub.s32 65536, 65536
          %256 = vsyncadd [#allocation4], %s255
          %s257 = sshll.u32 [#allocation3], 4
          %s258 = int_to_ptr.vmem [resolvable:$true] %s257
          %263 = dma.hbm_to_vmem [thread:$0]  %s2, 65536, %s258, [#allocation4], 512, 512, 32
        $region20: #{nlgat_forward.1} parent=11 // pred_fallthru
          _
        // Predicated region
        $region21: #{nlgat_forward.1} parent=11 // pred_check
          %p264 = pneg %p123
        $region22: #{nlgat_forward.1} parent=11 // pred_check_branch
          %266 = sbr.rel (%p264) target = $region24
        $region23: #{nlgat_forward.1} parent=11 // pred_region
          %s268 = ssub.s32 64, 64
          %269 = vsyncadd [#allocation7], %s268
          %s271 = sshll.u32 [#allocation6], 4
          %s272 = int_to_ptr.vmem [resolvable:$true] %s271
          %274 = dma.hbm_to_vmem [thread:$0]  %s3, 64, %s272, [#allocation7]
        $region24: #{nlgat_forward.1} parent=11 // pred_fallthru
          _
        // Predicated region
        $region25: #{nlgat_forward.1} parent=11 // pred_check
          %p275 = pneg %p144
        $region26: #{nlgat_forward.1} parent=11 // pred_check_branch
          %277 = sbr.rel (%p275) target = $region28
        $region27: #{nlgat_forward.1} parent=11 // pred_region
          %s279 = ssub.s32 16384, 16384
          %280 = vsyncadd [#allocation7], %s279
          %s281 = sshll.u32 [#allocation8], 4
          %s282 = int_to_ptr.vmem [resolvable:$true] %s281
          %287 = dma.hbm_to_vmem [thread:$0]  %s4, 16384, %s282, [#allocation7], 256, 256, 16
        $region28: #{nlgat_forward.1} parent=11 // pred_fallthru
          _
        // Predicated region
        $region29: #{nlgat_forward.1} parent=11 // pred_check
          %p288 = pneg %p165
        $region30: #{nlgat_forward.1} parent=11 // pred_check_branch
          %290 = sbr.rel (%p288) target = $region32
        $region31: #{nlgat_forward.1} parent=11 // pred_region
          %s292 = ssub.s32 32, 32
          %293 = vsyncadd [#allocation10], %s292
          %s295 = sshll.u32 [#allocation9], 4
          %s296 = int_to_ptr.vmem [resolvable:$true] %s295
          %298 = dma.hbm_to_vmem [thread:$0]  %s5, 32, %s296, [#allocation10]
        $region32: #{nlgat_forward.1} parent=11 // pred_fallthru
          _
        // Predicated region
        $region33: #{nlgat_forward.1} parent=11 // pred_check
          %p299 = pneg %p186
        $region34: #{nlgat_forward.1} parent=11 // pred_check_branch
          %301 = sbr.rel (%p299) target = $region36
        $region35: #{nlgat_forward.1} parent=11 // pred_region
          _
        $region36: #{nlgat_forward.1} parent=11 // pred_fallthru
          _
        // Predicated region
        $region37: #{nlgat_forward.1} parent=11 // pred_check
          %p302 = pneg %p207
        $region38: #{nlgat_forward.1} parent=11 // pred_check_branch
          %304 = sbr.rel (%p302) target = $region40
        $region39: #{nlgat_forward.1} parent=11 // pred_region
          _
        $region40: #{nlgat_forward.1} parent=11 // pred_fallthru
          _
      $region12: #{nlgat_forward.1} parent=5 // pred_fallthru
        _
      %p305 = scmp.lt.s32.totalorder %s20, 2
      // Predicated region
      $region41: #{nlgat_forward.1} parent=5 // pred_check
        %p306 = pneg %p305
      $region42: #{nlgat_forward.1} parent=5 // pred_check_branch
        %308 = sbr.rel (%p306) target = $region44
      $region43: #{nlgat_forward.1} parent=5 // pred_region
        // Predicated region
        $region45: #{nlgat_forward.1} parent=43 // pred_check
          %p309 = pneg %p54
        $region46: #{nlgat_forward.1} parent=43 // pred_check_branch
          %311 = sbr.rel (%p309) target = $region48
        $region47: #{nlgat_forward.1} parent=43 // pred_region
          %s312 = smul.u32 2, %s28
          %p313 = scmp.lt.s32.totalorder %s27, 1
          %s314 = scalar_select %p313, %s27, 1
          %p315 = scmp.lt.s32.totalorder %s312, 1
          %s316 = scalar_select %p315, %s312, 1
          %s317 = smul.addr %s314, 2
          %s318 = sadd.s32 %s316, %s317
          %s319 = smul.addr %s318, 4
          %s320 = scalar_lea.vmem %s0, %s319
          %s321 = smul.u32 2, %s28
        $region48: #{nlgat_forward.1} parent=43 // pred_fallthru
          _
      $region44: #{nlgat_forward.1} parent=5 // pred_fallthru
        _
      %p322 = scmp.le.s32.totalorder 1, %s20
      %p323 = scmp.lt.s32.totalorder %s20, 3
      %p324 = pnand %p322, %p323
      %p325 = pneg %p324
      // Predicated region
      $region49: #{nlgat_forward.1} parent=5 // pred_check
        _
      $region50: #{nlgat_forward.1} parent=5 // pred_check_branch
        %327 = sbr.rel (%p324) target = $region52
      $region51: #{nlgat_forward.1} parent=5 // pred_region
        %s328 = ssub.s32 %s20, 1
        // Predicated region
        $region53: #{nlgat_forward.1} parent=51 // pred_check
          %p329 = pneg %p102
        $region54: #{nlgat_forward.1} parent=51 // pred_check_branch
          %331 = sbr.rel (%p329) target = $region56
        $region55: #{nlgat_forward.1} parent=51 // pred_region
          %332 = dma.done [#allocation4], 65536
        $region56: #{nlgat_forward.1} parent=51 // pred_fallthru
          _
        // Predicated region
        $region57: #{nlgat_forward.1} parent=51 // pred_check
          %p333 = pneg %p123
        $region58: #{nlgat_forward.1} parent=51 // pred_check_branch
          %335 = sbr.rel (%p333) target = $region60
        $region59: #{nlgat_forward.1} parent=51 // pred_region
          %336 = dma.done [#allocation7], 64
        $region60: #{nlgat_forward.1} parent=51 // pred_fallthru
          _
        // Predicated region
        $region61: #{nlgat_forward.1} parent=51 // pred_check
          %p337 = pneg %p144
        $region62: #{nlgat_forward.1} parent=51 // pred_check_branch
          %339 = sbr.rel (%p337) target = $region64
        $region63: #{nlgat_forward.1} parent=51 // pred_region
          %340 = dma.done [#allocation7], 16384
        $region64: #{nlgat_forward.1} parent=51 // pred_fallthru
          _
        // Predicated region
        $region65: #{nlgat_forward.1} parent=51 // pred_check
          %p341 = pneg %p165
        $region66: #{nlgat_forward.1} parent=51 // pred_check_branch
          %343 = sbr.rel (%p341) target = $region68
        $region67: #{nlgat_forward.1} parent=51 // pred_region
          %344 = dma.done [#allocation10], 32
        $region68: #{nlgat_forward.1} parent=51 // pred_fallthru
          _
        %s345 = smul.u32 2, %s30
        %p346 = scmp.lt.s32.totalorder %s29, 1
        %s347 = scalar_select %p346, %s29, 1
        %p348 = scmp.lt.s32.totalorder %s345, 1
        %s349 = scalar_select %p348, %s345, 1
        %s350 = smul.addr %s347, 2
        %s351 = sadd.s32 %s349, %s350
        %s352 = smul.addr %s351, 4
        %s353 = scalar_lea.vmem %s0, %s352
        %p354 = pneg %p60
        %p355 = pneg %p57
        %p356 = pneg %p81
        %p357 = pneg %p78
        %p358 = pneg %p102
        %p359 = pneg %p99
        %p360 = pneg %p123
        %p361 = pneg %p120
        %p362 = pneg %p144
        %p363 = pneg %p141
        %p364 = pneg %p165
        %p365 = pneg %p162
        %p366 = pneg %p186
        %p367 = pneg %p183
        %p368 = pneg %p207
        %p369 = pneg %p204
        %p370 = pneg %p233
        %p371 = pneg %p230
        %s372 = sand.u32 %s220, 1
        %s373 = scalar_lea.sflag [#allocation5], %s372
        %s374 = sand.u32 %s220, 1
        %s375 = scalar_lea.vmem [#allocation11], %s374
        %s376 = smul.u32 2, %s30
        %p377 = scmp.lt.s32.totalorder %s29, 1
        %s378 = scalar_select %p377, %s29, 1
        %p379 = scmp.lt.s32.totalorder %s376, 1
        %s380 = scalar_select %p379, %s376, 1
        %s381 = smul.addr %s378, 2
        %s382 = sadd.s32 %s380, %s381
        %s383 = smul.addr %s382, 4
        %s384 = scalar_lea.vmem %s0, %s383
        %s385 = smul.u32 2, %s30
        %p387 = scmp.eq.s32.totalorder %s30, 0
        // Predicated region
        $region69: #{nlgat_forward.1} parent=51 // pred_check
          %p388 = pneg %p387
        $region70: #{nlgat_forward.1} parent=51 // pred_check_branch
          %390 = sbr.rel (%p388) target = $region72
        $region71: #{nlgat_forward.1} parent=51 // pred_region
          %391 = vst [vmem:[#allocation2] sm:$0xff] -inf
          %392 = vst [vmem:[#allocation2 + $0x8] sm:$0xff] -inf
          %393 = vst [vmem:[#allocation2 + $0x10] sm:$0xff] -inf
          %394 = vst [vmem:[#allocation2 + $0x18] sm:$0xff] -inf
          %395 = vst [vmem:[#allocation2 + $0x20] sm:$0xff] -inf
          %396 = vst [vmem:[#allocation2 + $0x28] sm:$0xff] -inf
          %397 = vst [vmem:[#allocation2 + $0x30] sm:$0xff] -inf
          %398 = vst [vmem:[#allocation2 + $0x38] sm:$0xff] -inf
        $region72: #{nlgat_forward.1} parent=51 // pred_fallthru
          _
        %v399 = vld [vmem:[%s384] sm:$0xf]
        %v400 = vld [vmem:[%s384 + $0x4] sm:$0xf]
        %v401 = vld [vmem:[%s1] sm:$0xff]
        %v402 = vld [vmem:[%s1 + $0x8] sm:$0xff]
        %v403 = vld [vmem:[%s1 + $0x10] sm:$0xff]
        %v404 = vld [vmem:[%s1 + $0x18] sm:$0xff]
        %v405 = vld [vmem:[%s1 + $0x20] sm:$0xff]
        %v406 = vld [vmem:[%s1 + $0x28] sm:$0xff]
        %v407 = vld [vmem:[%s1 + $0x30] sm:$0xff]
        %v408 = vld [vmem:[%s1 + $0x38] sm:$0xff]
        %v411 = vunpack.c.l.b16 %v399
        %v412 = vunpack.c.l.b16 %v400
        %v413 = vpack.c.b16 %v412, %v411
        %v422 = vunpack.c.l.b16 %v401
        %v423 = vunpack.c.h.b16 %v401
        %v424 = vunpack.c.l.b16 %v402
        %v425 = vunpack.c.h.b16 %v402
        %v426 = vunpack.c.l.b16 %v403
        %v427 = vunpack.c.h.b16 %v403
        %v428 = vunpack.c.l.b16 %v404
        %v429 = vunpack.c.h.b16 %v404
        %v430 = vunpack.c.l.b16 %v405
        %v431 = vunpack.c.h.b16 %v405
        %v432 = vunpack.c.l.b16 %v406
        %v433 = vunpack.c.h.b16 %v406
        %v434 = vunpack.c.l.b16 %v407
        %v435 = vunpack.c.h.b16 %v407
        %v436 = vunpack.c.l.b16 %v408
        %v437 = vunpack.c.h.b16 %v408
        %v438 = vpack.c.b16 %v422, %v422
        %v439 = vpack.c.b16 %v423, %v423
        %v440 = vpack.c.b16 %v424, %v424
        %v441 = vpack.c.b16 %v425, %v425
        %v442 = vpack.c.b16 %v426, %v426
        %v443 = vpack.c.b16 %v427, %v427
        %v444 = vpack.c.b16 %v428, %v428
        %v445 = vpack.c.b16 %v429, %v429
        %v446 = vpack.c.b16 %v430, %v430
        %v447 = vpack.c.b16 %v431, %v431
        %v448 = vpack.c.b16 %v432, %v432
        %v449 = vpack.c.b16 %v433, %v433
        %v450 = vpack.c.b16 %v434, %v434
        %v451 = vpack.c.b16 %v435, %v435
        %v452 = vpack.c.b16 %v436, %v436
        %v453 = vpack.c.b16 %v437, %v437
        %vm454 = vcmask 64512
        %v456 = vsel %vm454, %v413, 0
        %vm458 = vcmask 1043456
        %v460 = vsel %vm458, %v438, 0
        %v463 = vsel %vm458, %v439, 0
        %v466 = vsel %vm458, %v440, 0
        %v469 = vsel %vm458, %v441, 0
        %v472 = vsel %vm458, %v442, 0
        %v475 = vsel %vm458, %v443, 0
        %v478 = vsel %vm458, %v444, 0
        %v481 = vsel %vm458, %v445, 0
        %v484 = vsel %vm458, %v446, 0
        %v487 = vsel %vm458, %v447, 0
        %v490 = vsel %vm458, %v448, 0
        %v493 = vsel %vm458, %v449, 0
        %v496 = vsel %vm458, %v450, 0
        %v499 = vsel %vm458, %v451, 0
        %v502 = vsel %vm458, %v452, 0
        %v505 = vsel %vm458, %v453, 0
        %507 = vmatprep.subr.bf16.mxu0 %v463
        %508 = vmatpush1.bf16.msra.mxu0 %v460
        %509 = vmatprep.subr.bf16.mxu0 0
        %510 = vmatpush1.bf16.msra.mxu0 0
        %511 = vmatprep.subr.bf16.mxu0 0
        %512 = vmatpush1.bf16.msra.mxu0 0
        %513 = vmatprep.subr.bf16.mxu0 0
        %514 = vmatpush1.bf16.msra.mxu0 0
        %515 = vmatprep.subr.bf16.mxu0 0
        %516 = vmatpush1.bf16.msra.mxu0 0
        %517 = vmatprep.subr.bf16.mxu0 0
        %518 = vmatpush1.bf16.msra.mxu0 0
        %519 = vmatprep.subr.bf16.mxu0 0
        %520 = vmatpush1.bf16.msra.mxu0 0
        %521 = vmatprep.subr.bf16.mxu0 0
        %522 = vmatpush1.bf16.msra.mxu0 0
        %523 = vmatprep.subr.bf16.mxu0 0
        %524 = vmatpush1.bf16.msra.mxu0 0
        %525 = vmatprep.subr.bf16.mxu0 0
        %526 = vmatpush1.bf16.msra.mxu0 0
        %527 = vmatprep.subr.bf16.mxu0 0
        %528 = vmatpush1.bf16.msra.mxu0 0
        %529 = vmatprep.subr.bf16.mxu0 0
        %530 = vmatpush1.bf16.msra.mxu0 0
        %531 = vmatprep.subr.bf16.mxu0 0
        %532 = vmatpush1.bf16.msra.mxu0 0
        %533 = vmatprep.subr.bf16.mxu0 0
        %534 = vmatpush1.bf16.msra.mxu0 0
        %535 = vmatprep.subr.bf16.mxu0 0
        %536 = vmatpush1.bf16.msra.mxu0 0
        %537 = vmatprep.subr.bf16.mxu0 0
        %538 = vmatpush1.bf16.msra.mxu0 0
        %539 = vmatprep.mubr.bf16.mxu0 0
        %540 = vmatmul.mubr.bf16.gmra.mrb[0].mxu0 %v456
        %v541 = vpop.f32.mrb[0].mxu0
        %v542 = vadd.f32 0.0, %v541
        %v543 = vpop.f32.mrb[0].mxu0
        %v544 = vadd.f32 0.0, %v543
        %v545 = vpop.f32.mrb[0].mxu0
        %v546 = vadd.f32 0.0, %v545
        %v547 = vpop.f32.mrb[0].mxu0
        %v548 = vadd.f32 0.0, %v547
        %549 = vdwg.mxu0
        %550 = vmatprep.subr.bf16.mxu0 %v469
        %551 = vmatpush1.bf16.msra.mxu0 %v466
        %552 = vmatprep.subr.bf16.mxu0 0
        %553 = vmatpush1.bf16.msra.mxu0 0
        %554 = vmatprep.subr.bf16.mxu0 0
        %555 = vmatpush1.bf16.msra.mxu0 0
        %556 = vmatprep.subr.bf16.mxu0 0
        %557 = vmatpush1.bf16.msra.mxu0 0
        %558 = vmatprep.subr.bf16.mxu0 0
        %559 = vmatpush1.bf16.msra.mxu0 0
        %560 = vmatprep.subr.bf16.mxu0 0
        %561 = vmatpush1.bf16.msra.mxu0 0
        %562 = vmatprep.subr.bf16.mxu0 0
        %563 = vmatpush1.bf16.msra.mxu0 0
        %564 = vmatprep.subr.bf16.mxu0 0
        %565 = vmatpush1.bf16.msra.mxu0 0
        %566 = vmatprep.subr.bf16.mxu0 0
        %567 = vmatpush1.bf16.msra.mxu0 0
        %568 = vmatprep.subr.bf16.mxu0 0
        %569 = vmatpush1.bf16.msra.mxu0 0
        %570 = vmatprep.subr.bf16.mxu0 0
        %571 = vmatpush1.bf16.msra.mxu0 0
        %572 = vmatprep.subr.bf16.mxu0 0
        %573 = vmatpush1.bf16.msra.mxu0 0
        %574 = vmatprep.subr.bf16.mxu0 0
        %575 = vmatpush1.bf16.msra.mxu0 0
        %576 = vmatprep.subr.bf16.mxu0 0
        %577 = vmatpush1.bf16.msra.mxu0 0
        %578 = vmatprep.subr.bf16.mxu0 0
        %579 = vmatpush1.bf16.msra.mxu0 0
        %580 = vmatprep.subr.bf16.mxu0 0
        %581 = vmatpush1.bf16.msra.mxu0 0
        %582 = vmatprep.mubr.bf16.mxu0 0
        %583 = vmatmul.mubr.bf16.gmra.mrb[0].mxu0 %v456
        %v584 = vpop.f32.mrb[0].mxu0
        %v585 = vadd.f32 0.0, %v584
        %v586 = vpop.f32.mrb[0].mxu0
        %v587 = vadd.f32 0.0, %v586
        %v588 = vpop.f32.mrb[0].mxu0
        %v589 = vadd.f32 0.0, %v588
        %v590 = vpop.f32.mrb[0].mxu0
        %v591 = vadd.f32 0.0, %v590
        %592 = vdwg.mxu0
        %593 = vmatprep.subr.bf16.mxu0 %v475
        %594 = vmatpush1.bf16.msra.mxu0 %v472
        %595 = vmatprep.subr.bf16.mxu0 0
        %596 = vmatpush1.bf16.msra.mxu0 0
        %597 = vmatprep.subr.bf16.mxu0 0
        %598 = vmatpush1.bf16.msra.mxu0 0
        %599 = vmatprep.subr.bf16.mxu0 0
        %600 = vmatpush1.bf16.msra.mxu0 0
        %601 = vmatprep.subr.bf16.mxu0 0
        %602 = vmatpush1.bf16.msra.mxu0 0
        %603 = vmatprep.subr.bf16.mxu0 0
        %604 = vmatpush1.bf16.msra.mxu0 0
        %605 = vmatprep.subr.bf16.mxu0 0
        %606 = vmatpush1.bf16.msra.mxu0 0
        %607 = vmatprep.subr.bf16.mxu0 0
        %608 = vmatpush1.bf16.msra.mxu0 0
        %609 = vmatprep.subr.bf16.mxu0 0
        %610 = vmatpush1.bf16.msra.mxu0 0
        %611 = vmatprep.subr.bf16.mxu0 0
        %612 = vmatpush1.bf16.msra.mxu0 0
        %613 = vmatprep.subr.bf16.mxu0 0
        %614 = vmatpush1.bf16.msra.mxu0 0
        %615 = vmatprep.subr.bf16.mxu0 0
        %616 = vmatpush1.bf16.msra.mxu0 0
        %617 = vmatprep.subr.bf16.mxu0 0
        %618 = vmatpush1.bf16.msra.mxu0 0
        %619 = vmatprep.subr.bf16.mxu0 0
        %620 = vmatpush1.bf16.msra.mxu0 0
        %621 = vmatprep.subr.bf16.mxu0 0
        %622 = vmatpush1.bf16.msra.mxu0 0
        %623 = vmatprep.subr.bf16.mxu0 0
        %624 = vmatpush1.bf16.msra.mxu0 0
        %625 = vmatprep.mubr.bf16.mxu0 0
        %626 = vmatmul.mubr.bf16.gmra.mrb[0].mxu0 %v456
        %v627 = vpop.f32.mrb[0].mxu0
        %v628 = vadd.f32 0.0, %v627
        %v629 = vpop.f32.mrb[0].mxu0
        %v630 = vadd.f32 0.0, %v629
        %v631 = vpop.f32.mrb[0].mxu0
        %v632 = vadd.f32 0.0, %v631
        %v633 = vpop.f32.mrb[0].mxu0
        %v634 = vadd.f32 0.0, %v633
        %635 = vdwg.mxu0
        %636 = vmatprep.subr.bf16.mxu0 %v481
        %637 = vmatpush1.bf16.msra.mxu0 %v478
        %638 = vmatprep.subr.bf16.mxu0 0
        %639 = vmatpush1.bf16.msra.mxu0 0
        %640 = vmatprep.subr.bf16.mxu0 0
        %641 = vmatpush1.bf16.msra.mxu0 0
        %642 = vmatprep.subr.bf16.mxu0 0
        %643 = vmatpush1.bf16.msra.mxu0 0
        %644 = vmatprep.subr.bf16.mxu0 0
        %645 = vmatpush1.bf16.msra.mxu0 0
        %646 = vmatprep.subr.bf16.mxu0 0
        %647 = vmatpush1.bf16.msra.mxu0 0
        %648 = vmatprep.subr.bf16.mxu0 0
        %649 = vmatpush1.bf16.msra.mxu0 0
        %650 = vmatprep.subr.bf16.mxu0 0
        %651 = vmatpush1.bf16.msra.mxu0 0
        %652 = vmatprep.subr.bf16.mxu0 0
        %653 = vmatpush1.bf16.msra.mxu0 0
        %654 = vmatprep.subr.bf16.mxu0 0
        %655 = vmatpush1.bf16.msra.mxu0 0
        %656 = vmatprep.subr.bf16.mxu0 0
        %657 = vmatpush1.bf16.msra.mxu0 0
        %658 = vmatprep.subr.bf16.mxu0 0
        %659 = vmatpush1.bf16.msra.mxu0 0
        %660 = vmatprep.subr.bf16.mxu0 0
        %661 = vmatpush1.bf16.msra.mxu0 0
        %662 = vmatprep.subr.bf16.mxu0 0
        %663 = vmatpush1.bf16.msra.mxu0 0
        %664 = vmatprep.subr.bf16.mxu0 0
        %665 = vmatpush1.bf16.msra.mxu0 0
        %666 = vmatprep.subr.bf16.mxu0 0
        %667 = vmatpush1.bf16.msra.mxu0 0
        %668 = vmatprep.mubr.bf16.mxu0 0
        %669 = vmatmul.mubr.bf16.gmra.mrb[0].mxu0 %v456
        %v670 = vpop.f32.mrb[0].mxu0
        %v671 = vadd.f32 0.0, %v670
        %v672 = vpop.f32.mrb[0].mxu0
        %v673 = vadd.f32 0.0, %v672
        %v674 = vpop.f32.mrb[0].mxu0
        %v675 = vadd.f32 0.0, %v674
        %v676 = vpop.f32.mrb[0].mxu0
        %v677 = vadd.f32 0.0, %v676
        %678 = vdwg.mxu0
        %679 = vmatprep.subr.bf16.mxu0 %v487
        %680 = vmatpush1.bf16.msra.mxu0 %v484
        %681 = vmatprep.subr.bf16.mxu0 0
        %682 = vmatpush1.bf16.msra.mxu0 0
        %683 = vmatprep.subr.bf16.mxu0 0
        %684 = vmatpush1.bf16.msra.mxu0 0
        %685 = vmatprep.subr.bf16.mxu0 0
        %686 = vmatpush1.bf16.msra.mxu0 0
        %687 = vmatprep.subr.bf16.mxu0 0
        %688 = vmatpush1.bf16.msra.mxu0 0
        %689 = vmatprep.subr.bf16.mxu0 0
        %690 = vmatpush1.bf16.msra.mxu0 0
        %691 = vmatprep.subr.bf16.mxu0 0
        %692 = vmatpush1.bf16.msra.mxu0 0
        %693 = vmatprep.subr.bf16.mxu0 0
        %694 = vmatpush1.bf16.msra.mxu0 0
        %695 = vmatprep.subr.bf16.mxu0 0
        %696 = vmatpush1.bf16.msra.mxu0 0
        %697 = vmatprep.subr.bf16.mxu0 0
        %698 = vmatpush1.bf16.msra.mxu0 0
        %699 = vmatprep.subr.bf16.mxu0 0
        %700 = vmatpush1.bf16.msra.mxu0 0
        %701 = vmatprep.subr.bf16.mxu0 0
        %702 = vmatpush1.bf16.msra.mxu0 0
        %703 = vmatprep.subr.bf16.mxu0 0
        %704 = vmatpush1.bf16.msra.mxu0 0
        %705 = vmatprep.subr.bf16.mxu0 0
        %706 = vmatpush1.bf16.msra.mxu0 0
        %707 = vmatprep.subr.bf16.mxu0 0
        %708 = vmatpush1.bf16.msra.mxu0 0
        %709 = vmatprep.subr.bf16.mxu0 0
        %710 = vmatpush1.bf16.msra.mxu0 0
        %711 = vmatprep.mubr.bf16.mxu0 0
        %712 = vmatmul.mubr.bf16.gmra.mrb[0].mxu0 %v456
        %v713 = vpop.f32.mrb[0].mxu0
        %v714 = vadd.f32 0.0, %v713
        %v715 = vpop.f32.mrb[0].mxu0
        %v716 = vadd.f32 0.0, %v715
        %v717 = vpop.f32.mrb[0].mxu0
        %v718 = vadd.f32 0.0, %v717
        %v719 = vpop.f32.mrb[0].mxu0
        %v720 = vadd.f32 0.0, %v719
        %721 = vdwg.mxu0
        %722 = vmatprep.subr.bf16.mxu0 %v493
        %723 = vmatpush1.bf16.msra.mxu0 %v490
        %724 = vmatprep.subr.bf16.mxu0 0
        %725 = vmatpush1.bf16.msra.mxu0 0
        %726 = vmatprep.subr.bf16.mxu0 0
        %727 = vmatpush1.bf16.msra.mxu0 0
        %728 = vmatprep.subr.bf16.mxu0 0
        %729 = vmatpush1.bf16.msra.mxu0 0
        %730 = vmatprep.subr.bf16.mxu0 0
        %731 = vmatpush1.bf16.msra.mxu0 0
        %732 = vmatprep.subr.bf16.mxu0 0
        %733 = vmatpush1.bf16.msra.mxu0 0
        %734 = vmatprep.subr.bf16.mxu0 0
        %735 = vmatpush1.bf16.msra.mxu0 0
        %736 = vmatprep.subr.bf16.mxu0 0
        %737 = vmatpush1.bf16.msra.mxu0 0
        %738 = vmatprep.subr.bf16.mxu0 0
        %739 = vmatpush1.bf16.msra.mxu0 0
        %740 = vmatprep.subr.bf16.mxu0 0
        %741 = vmatpush1.bf16.msra.mxu0 0
        %742 = vmatprep.subr.bf16.mxu0 0
        %743 = vmatpush1.bf16.msra.mxu0 0
        %744 = vmatprep.subr.bf16.mxu0 0
        %745 = vmatpush1.bf16.msra.mxu0 0
        %746 = vmatprep.subr.bf16.mxu0 0
        %747 = vmatpush1.bf16.msra.mxu0 0
        %748 = vmatprep.subr.bf16.mxu0 0
        %749 = vmatpush1.bf16.msra.mxu0 0
        %750 = vmatprep.subr.bf16.mxu0 0
        %751 = vmatpush1.bf16.msra.mxu0 0
        %752 = vmatprep.subr.bf16.mxu0 0
        %753 = vmatpush1.bf16.msra.mxu0 0
        %754 = vmatprep.mubr.bf16.mxu0 0
        %755 = vmatmul.mubr.bf16.gmra.mrb[0].mxu0 %v456
        %v756 = vpop.f32.mrb[0].mxu0
        %v757 = vadd.f32 0.0, %v756
        %v758 = vpop.f32.mrb[0].mxu0
        %v759 = vadd.f32 0.0, %v758
        %v760 = vpop.f32.mrb[0].mxu0
        %v761 = vadd.f32 0.0, %v760
        %v762 = vpop.f32.mrb[0].mxu0
        %v763 = vadd.f32 0.0, %v762
        %764 = vdwg.mxu0
        %765 = vmatprep.subr.bf16.mxu0 %v499
        %766 = vmatpush1.bf16.msra.mxu0 %v496
        %767 = vmatprep.subr.bf16.mxu0 0
        %768 = vmatpush1.bf16.msra.mxu0 0
        %769 = vmatprep.subr.bf16.mxu0 0
        %770 = vmatpush1.bf16.msra.mxu0 0
        %771 = vmatprep.subr.bf16.mxu0 0
        %772 = vmatpush1.bf16.msra.mxu0 0
        %773 = vmatprep.subr.bf16.mxu0 0
        %774 = vmatpush1.bf16.msra.mxu0 0
        %775 = vmatprep.subr.bf16.mxu0 0
        %776 = vmatpush1.bf16.msra.mxu0 0
        %777 = vmatprep.subr.bf16.mxu0 0
        %778 = vmatpush1.bf16.msra.mxu0 0
        %779 = vmatprep.subr.bf16.mxu0 0
        %780 = vmatpush1.bf16.msra.mxu0 0
        %781 = vmatprep.subr.bf16.mxu0 0
        %782 = vmatpush1.bf16.msra.mxu0 0
        %783 = vmatprep.subr.bf16.mxu0 0
        %784 = vmatpush1.bf16.msra.mxu0 0
        %785 = vmatprep.subr.bf16.mxu0 0
        %786 = vmatpush1.bf16.msra.mxu0 0
        %787 = vmatprep.subr.bf16.mxu0 0
        %788 = vmatpush1.bf16.msra.mxu0 0
        %789 = vmatprep.subr.bf16.mxu0 0
        %790 = vmatpush1.bf16.msra.mxu0 0
        %791 = vmatprep.subr.bf16.mxu0 0
        %792 = vmatpush1.bf16.msra.mxu0 0
        %793 = vmatprep.subr.bf16.mxu0 0
        %794 = vmatpush1.bf16.msra.mxu0 0
        %795 = vmatprep.subr.bf16.mxu0 0
        %796 = vmatpush1.bf16.msra.mxu0 0
        %797 = vmatprep.mubr.bf16.mxu0 0
        %798 = vmatmul.mubr.bf16.gmra.mrb[0].mxu0 %v456
        %v799 = vpop.f32.mrb[0].mxu0
        %v800 = vadd.f32 0.0, %v799
        %v801 = vpop.f32.mrb[0].mxu0
        %v802 = vadd.f32 0.0, %v801
        %v803 = vpop.f32.mrb[0].mxu0
        %v804 = vadd.f32 0.0, %v803
        %v805 = vpop.f32.mrb[0].mxu0
        %v806 = vadd.f32 0.0, %v805
        %807 = vdwg.mxu0
        %808 = vmatprep.subr.bf16.mxu0 %v505
        %809 = vmatpush1.bf16.msra.mxu0 %v502
        %810 = vmatprep.subr.bf16.mxu0 0
        %811 = vmatpush1.bf16.msra.mxu0 0
        %812 = vmatprep.subr.bf16.mxu0 0
        %813 = vmatpush1.bf16.msra.mxu0 0
        %814 = vmatprep.subr.bf16.mxu0 0
        %815 = vmatpush1.bf16.msra.mxu0 0
        %816 = vmatprep.subr.bf16.mxu0 0
        %817 = vmatpush1.bf16.msra.mxu0 0
        %818 = vmatprep.subr.bf16.mxu0 0
        %819 = vmatpush1.bf16.msra.mxu0 0
        %820 = vmatprep.subr.bf16.mxu0 0
        %821 = vmatpush1.bf16.msra.mxu0 0
        %822 = vmatprep.subr.bf16.mxu0 0
        %823 = vmatpush1.bf16.msra.mxu0 0
        %824 = vmatprep.subr.bf16.mxu0 0
        %825 = vmatpush1.bf16.msra.mxu0 0
        %826 = vmatprep.subr.bf16.mxu0 0
        %827 = vmatpush1.bf16.msra.mxu0 0
        %828 = vmatprep.subr.bf16.mxu0 0
        %829 = vmatpush1.bf16.msra.mxu0 0
        %830 = vmatprep.subr.bf16.mxu0 0
        %831 = vmatpush1.bf16.msra.mxu0 0
        %832 = vmatprep.subr.bf16.mxu0 0
        %833 = vmatpush1.bf16.msra.mxu0 0
        %834 = vmatprep.subr.bf16.mxu0 0
        %835 = vmatpush1.bf16.msra.mxu0 0
        %836 = vmatprep.subr.bf16.mxu0 0
        %837 = vmatpush1.bf16.msra.mxu0 0
        %838 = vmatprep.subr.bf16.mxu0 0
        %839 = vmatpush1.bf16.msra.mxu0 0
        %840 = vmatprep.mubr.bf16.mxu0 0
        %841 = vmatmul.mubr.bf16.gmra.mrb[0].mxu0 %v456
        %v842 = vpop.f32.mrb[0].mxu0
        %v843 = vadd.f32 0.0, %v842
        %v844 = vpop.f32.mrb[0].mxu0
        %v845 = vadd.f32 0.0, %v844
        %v846 = vpop.f32.mrb[0].mxu0
        %v847 = vadd.f32 0.0, %v846
        %v848 = vpop.f32.mrb[0].mxu0
        %v849 = vadd.f32 0.0, %v848
        %850 = vdwg.mxu0
        %v851 = vmul.f32 %v542, %v714
        %v852 = vmul.f32 %v544, %v716
        %v853 = vmul.f32 %v585, %v757
        %v854 = vmul.f32 %v587, %v759
        %v855 = vmul.f32 %v628, %v800
        %v856 = vmul.f32 %v630, %v802
        %v857 = vmul.f32 %v671, %v843
        %v858 = vmul.f32 %v673, %v845
        %v859 = vmul.f32 %v546, %v718
        %v860 = vmul.f32 %v548, %v720
        %v861 = vmul.f32 %v589, %v761
        %v862 = vmul.f32 %v591, %v763
        %v863 = vmul.f32 %v632, %v804
        %v864 = vmul.f32 %v634, %v806
        %v865 = vmul.f32 %v675, %v847
        %v866 = vmul.f32 %v677, %v849
        %v867 = vmax.f32 %v851, %v859
        %v868 = vmax.f32 %v852, %v860
        %v869 = vmax.f32 %v853, %v861
        %v870 = vmax.f32 %v854, %v862
        %v871 = vmax.f32 %v855, %v863
        %v872 = vmax.f32 %v856, %v864
        %v873 = vmax.f32 %v857, %v865
        %v874 = vmax.f32 %v858, %v866
        %v875 = vld [vmem:[#allocation2] sm:$0xff]
        %v876 = vld [vmem:[#allocation2 + $0x8] sm:$0xff]
        %v877 = vld [vmem:[#allocation2 + $0x10] sm:$0xff]
        %v878 = vld [vmem:[#allocation2 + $0x18] sm:$0xff]
        %v879 = vld [vmem:[#allocation2 + $0x20] sm:$0xff]
        %v880 = vld [vmem:[#allocation2 + $0x28] sm:$0xff]
        %v881 = vld [vmem:[#allocation2 + $0x30] sm:$0xff]
        %v882 = vld [vmem:[#allocation2 + $0x38] sm:$0xff]
        %v883 = vmax.f32 %v875, %v867
        %v884 = vmax.f32 %v876, %v868
        %v885 = vmax.f32 %v877, %v869
        %v886 = vmax.f32 %v878, %v870
        %v887 = vmax.f32 %v879, %v871
        %v888 = vmax.f32 %v880, %v872
        %v889 = vmax.f32 %v881, %v873
        %v890 = vmax.f32 %v882, %v874
        %891 = vst [vmem:[#allocation2] sm:$0xff] %v883
        %892 = vst [vmem:[#allocation2 + $0x8] sm:$0xff] %v884
        %893 = vst [vmem:[#allocation2 + $0x10] sm:$0xff] %v885
        %894 = vst [vmem:[#allocation2 + $0x18] sm:$0xff] %v886
        %895 = vst [vmem:[#allocation2 + $0x20] sm:$0xff] %v887
        %896 = vst [vmem:[#allocation2 + $0x28] sm:$0xff] %v888
        %897 = vst [vmem:[#allocation2 + $0x30] sm:$0xff] %v889
        %898 = vst [vmem:[#allocation2 + $0x38] sm:$0xff] %v890
        // Predicated region
        $region73: #{nlgat_forward.1} parent=51 // pred_check
          %p899 = pneg %p387
        $region74: #{nlgat_forward.1} parent=51 // pred_check_branch
          %901 = sbr.rel (%p899) target = $region76
        $region75: #{nlgat_forward.1} parent=51 // pred_region
          %v902 = vld [vmem:[#allocation2] sm:$0xff]
          %v903 = vld [vmem:[#allocation2 + $0x8] sm:$0xff]
          %v904 = vld [vmem:[#allocation2 + $0x10] sm:$0xff]
          %v905 = vld [vmem:[#allocation2 + $0x18] sm:$0xff]
          %v906 = vld [vmem:[#allocation2 + $0x20] sm:$0xff]
          %v907 = vld [vmem:[#allocation2 + $0x28] sm:$0xff]
          %v908 = vld [vmem:[#allocation2 + $0x30] sm:$0xff]
          %v909 = vld [vmem:[#allocation2 + $0x38] sm:$0xff]
          %v910 = vrot.slane %v902, 4
          %v911 = vmax.f32 %v902, %v910
          %v912 = vrot.slane %v911, 2
          %v913 = vmax.f32 %v911, %v912
          %v914 = vrot.slane %v913, 1
          %v915 = vmax.f32 %v913, %v914
          %v916 = vrot.slane %v903, 4
          %v917 = vmax.f32 %v903, %v916
          %v918 = vrot.slane %v917, 2
          %v919 = vmax.f32 %v917, %v918
          %v920 = vrot.slane %v919, 1
          %v921 = vmax.f32 %v919, %v920
          %v922 = vrot.slane %v904, 4
          %v923 = vmax.f32 %v904, %v922
          %v924 = vrot.slane %v923, 2
          %v925 = vmax.f32 %v923, %v924
          %v926 = vrot.slane %v925, 1
          %v927 = vmax.f32 %v925, %v926
          %v928 = vrot.slane %v905, 4
          %v929 = vmax.f32 %v905, %v928
          %v930 = vrot.slane %v929, 2
          %v931 = vmax.f32 %v929, %v930
          %v932 = vrot.slane %v931, 1
          %v933 = vmax.f32 %v931, %v932
          %v934 = vrot.slane %v906, 4
          %v935 = vmax.f32 %v906, %v934
          %v936 = vrot.slane %v935, 2
          %v937 = vmax.f32 %v935, %v936
          %v938 = vrot.slane %v937, 1
          %v939 = vmax.f32 %v937, %v938
          %v940 = vrot.slane %v907, 4
          %v941 = vmax.f32 %v907, %v940
          %v942 = vrot.slane %v941, 2
          %v943 = vmax.f32 %v941, %v942
          %v944 = vrot.slane %v943, 1
          %v945 = vmax.f32 %v943, %v944
          %v946 = vrot.slane %v908, 4
          %v947 = vmax.f32 %v908, %v946
          %v948 = vrot.slane %v947, 2
          %v949 = vmax.f32 %v947, %v948
          %v950 = vrot.slane %v949, 1
          %v951 = vmax.f32 %v949, %v950
          %v952 = vrot.slane %v909, 4
          %v953 = vmax.f32 %v909, %v952
          %v954 = vrot.slane %v953, 2
          %v955 = vmax.f32 %v953, %v954
          %v956 = vrot.slane %v955, 1
          %v957 = vmax.f32 %v955, %v956
          %v958 = vld [vmem:[#allocation3] sm:$0xff]
          %v959 = vld [vmem:[#allocation3 + $0x8] sm:$0xff]
          %v960 = vld [vmem:[#allocation3 + $0x10] sm:$0xff]
          %v961 = vld [vmem:[#allocation3 + $0x18] sm:$0xff]
          %v962 = vld [vmem:[#allocation3 + $0x20] sm:$0xff]
          %v963 = vld [vmem:[#allocation3 + $0x28] sm:$0xff]
          %v964 = vld [vmem:[#allocation3 + $0x30] sm:$0xff]
          %v965 = vld [vmem:[#allocation3 + $0x38] sm:$0xff]
          %v966 = vld [vmem:[#allocation3 + $0x40] sm:$0xff]
          %v967 = vld [vmem:[#allocation3 + $0x48] sm:$0xff]
          %v968 = vld [vmem:[#allocation3 + $0x50] sm:$0xff]
          %v969 = vld [vmem:[#allocation3 + $0x58] sm:$0xff]
          %v970 = vld [vmem:[#allocation3 + $0x60] sm:$0xff]
          %v971 = vld [vmem:[#allocation3 + $0x68] sm:$0xff]
          %v972 = vld [vmem:[#allocation3 + $0x70] sm:$0xff]
          %v973 = vld [vmem:[#allocation3 + $0x78] sm:$0xff]
          %v974 = vld [vmem:[#allocation3 + $0x80] sm:$0xff]
          %v975 = vld [vmem:[#allocation3 + $0x88] sm:$0xff]
          %v976 = vld [vmem:[#allocation3 + $0x90] sm:$0xff]
          %v977 = vld [vmem:[#allocation3 + $0x98] sm:$0xff]
          %v978 = vld [vmem:[#allocation3 + $0xa0] sm:$0xff]
          %v979 = vld [vmem:[#allocation3 + $0xa8] sm:$0xff]
          %v980 = vld [vmem:[#allocation3 + $0xb0] sm:$0xff]
          %v981 = vld [vmem:[#allocation3 + $0xb8] sm:$0xff]
          %v982 = vld [vmem:[#allocation3 + $0xc0] sm:$0xff]
          %v983 = vld [vmem:[#allocation3 + $0xc8] sm:$0xff]
          %v984 = vld [vmem:[#allocation3 + $0xd0] sm:$0xff]
          %v985 = vld [vmem:[#allocation3 + $0xd8] sm:$0xff]
          %v986 = vld [vmem:[#allocation3 + $0xe0] sm:$0xff]
          %v987 = vld [vmem:[#allocation3 + $0xe8] sm:$0xff]
          %v988 = vld [vmem:[#allocation3 + $0xf0] sm:$0xff]
          %v989 = vld [vmem:[#allocation3 + $0xf8] sm:$0xff]
          %v990 = vld [vmem:[#allocation3 + $0x100] sm:$0xff]
          %v991 = vld [vmem:[#allocation3 + $0x108] sm:$0xff]
          %v992 = vld [vmem:[#allocation3 + $0x110] sm:$0xff]
          %v993 = vld [vmem:[#allocation3 + $0x118] sm:$0xff]
          %v994 = vld [vmem:[#allocation3 + $0x120] sm:$0xff]
          %v995 = vld [vmem:[#allocation3 + $0x128] sm:$0xff]
          %v996 = vld [vmem:[#allocation3 + $0x130] sm:$0xff]
          %v997 = vld [vmem:[#allocation3 + $0x138] sm:$0xff]
          %v998 = vld [vmem:[#allocation3 + $0x140] sm:$0xff]
          %v999 = vld [vmem:[#allocation3 + $0x148] sm:$0xff]
          %v1000 = vld [vmem:[#allocation3 + $0x150] sm:$0xff]
          %v1001 = vld [vmem:[#allocation3 + $0x158] sm:$0xff]
          %v1002 = vld [vmem:[#allocation3 + $0x160] sm:$0xff]
          %v1003 = vld [vmem:[#allocation3 + $0x168] sm:$0xff]
          %v1004 = vld [vmem:[#allocation3 + $0x170] sm:$0xff]
          %v1005 = vld [vmem:[#allocation3 + $0x178] sm:$0xff]
          %v1006 = vld [vmem:[#allocation3 + $0x180] sm:$0xff]
          %v1007 = vld [vmem:[#allocation3 + $0x188] sm:$0xff]
          %v1008 = vld [vmem:[#allocation3 + $0x190] sm:$0xff]
          %v1009 = vld [vmem:[#allocation3 + $0x198] sm:$0xff]
          %v1010 = vld [vmem:[#allocation3 + $0x1a0] sm:$0xff]
          %v1011 = vld [vmem:[#allocation3 + $0x1a8] sm:$0xff]
          %v1012 = vld [vmem:[#allocation3 + $0x1b0] sm:$0xff]
          %v1013 = vld [vmem:[#allocation3 + $0x1b8] sm:$0xff]
          %v1014 = vld [vmem:[#allocation3 + $0x1c0] sm:$0xff]
          %v1015 = vld [vmem:[#allocation3 + $0x1c8] sm:$0xff]
          %v1016 = vld [vmem:[#allocation3 + $0x1d0] sm:$0xff]
          %v1017 = vld [vmem:[#allocation3 + $0x1d8] sm:$0xff]
          %v1018 = vld [vmem:[#allocation3 + $0x1e0] sm:$0xff]
          %v1019 = vld [vmem:[#allocation3 + $0x1e8] sm:$0xff]
          %v1020 = vld [vmem:[#allocation3 + $0x1f0] sm:$0xff]
          %v1021 = vld [vmem:[#allocation3 + $0x1f8] sm:$0xff]
          %v1022 = vld [vmem:[#allocation3 + $0x200] sm:$0xff]
          %v1023 = vld [vmem:[#allocation3 + $0x208] sm:$0xff]
          %v1024 = vld [vmem:[#allocation3 + $0x210] sm:$0xff]
          %v1025 = vld [vmem:[#allocation3 + $0x218] sm:$0xff]
          %v1026 = vld [vmem:[#allocation3 + $0x220] sm:$0xff]
          %v1027 = vld [vmem:[#allocation3 + $0x228] sm:$0xff]
          %v1028 = vld [vmem:[#allocation3 + $0x230] sm:$0xff]
          %v1029 = vld [vmem:[#allocation3 + $0x238] sm:$0xff]
          %v1030 = vld [vmem:[#allocation3 + $0x240] sm:$0xff]
          %v1031 = vld [vmem:[#allocation3 + $0x248] sm:$0xff]
          %v1032 = vld [vmem:[#allocation3 + $0x250] sm:$0xff]
          %v1033 = vld [vmem:[#allocation3 + $0x258] sm:$0xff]
          %v1034 = vld [vmem:[#allocation3 + $0x260] sm:$0xff]
          %v1035 = vld [vmem:[#allocation3 + $0x268] sm:$0xff]
          %v1036 = vld [vmem:[#allocation3 + $0x270] sm:$0xff]
          %v1037 = vld [vmem:[#allocation3 + $0x278] sm:$0xff]
          %v1038 = vld [vmem:[#allocation3 + $0x280] sm:$0xff]
          %v1039 = vld [vmem:[#allocation3 + $0x288] sm:$0xff]
          %v1040 = vld [vmem:[#allocation3 + $0x290] sm:$0xff]
          %v1041 = vld [vmem:[#allocation3 + $0x298] sm:$0xff]
          %v1042 = vld [vmem:[#allocation3 + $0x2a0] sm:$0xff]
          %v1043 = vld [vmem:[#allocation3 + $0x2a8] sm:$0xff]
          %v1044 = vld [vmem:[#allocation3 + $0x2b0] sm:$0xff]
          %v1045 = vld [vmem:[#allocation3 + $0x2b8] sm:$0xff]
          %v1046 = vld [vmem:[#allocation3 + $0x2c0] sm:$0xff]
          %v1047 = vld [vmem:[#allocation3 + $0x2c8] sm:$0xff]
          %v1048 = vld [vmem:[#allocation3 + $0x2d0] sm:$0xff]
          %v1049 = vld [vmem:[#allocation3 + $0x2d8] sm:$0xff]
          %v1050 = vld [vmem:[#allocation3 + $0x2e0] sm:$0xff]
          %v1051 = vld [vmem:[#allocation3 + $0x2e8] sm:$0xff]
          %v1052 = vld [vmem:[#allocation3 + $0x2f0] sm:$0xff]
          %v1053 = vld [vmem:[#allocation3 + $0x2f8] sm:$0xff]
          %v1054 = vld [vmem:[#allocation3 + $0x300] sm:$0xff]
          %v1055 = vld [vmem:[#allocation3 + $0x308] sm:$0xff]
          %v1056 = vld [vmem:[#allocation3 + $0x310] sm:$0xff]
          %v1057 = vld [vmem:[#allocation3 + $0x318] sm:$0xff]
          %v1058 = vld [vmem:[#allocation3 + $0x320] sm:$0xff]
          %v1059 = vld [vmem:[#allocation3 + $0x328] sm:$0xff]
          %v1060 = vld [vmem:[#allocation3 + $0x330] sm:$0xff]
          %v1061 = vld [vmem:[#allocation3 + $0x338] sm:$0xff]
          %v1062 = vld [vmem:[#allocation3 + $0x340] sm:$0xff]
          %v1063 = vld [vmem:[#allocation3 + $0x348] sm:$0xff]
          %v1064 = vld [vmem:[#allocation3 + $0x350] sm:$0xff]
          %v1065 = vld [vmem:[#allocation3 + $0x358] sm:$0xff]
          %v1066 = vld [vmem:[#allocation3 + $0x360] sm:$0xff]
          %v1067 = vld [vmem:[#allocation3 + $0x368] sm:$0xff]
          %v1068 = vld [vmem:[#allocation3 + $0x370] sm:$0xff]
          %v1069 = vld [vmem:[#allocation3 + $0x378] sm:$0xff]
          %v1070 = vld [vmem:[#allocation3 + $0x380] sm:$0xff]
          %v1071 = vld [vmem:[#allocation3 + $0x388] sm:$0xff]
          %v1072 = vld [vmem:[#allocation3 + $0x390] sm:$0xff]
          %v1073 = vld [vmem:[#allocation3 + $0x398] sm:$0xff]
          %v1074 = vld [vmem:[#allocation3 + $0x3a0] sm:$0xff]
          %v1075 = vld [vmem:[#allocation3 + $0x3a8] sm:$0xff]
          %v1076 = vld [vmem:[#allocation3 + $0x3b0] sm:$0xff]
          %v1077 = vld [vmem:[#allocation3 + $0x3b8] sm:$0xff]
          %v1078 = vld [vmem:[#allocation3 + $0x3c0] sm:$0xff]
          %v1079 = vld [vmem:[#allocation3 + $0x3c8] sm:$0xff]
          %v1080 = vld [vmem:[#allocation3 + $0x3d0] sm:$0xff]
          %v1081 = vld [vmem:[#allocation3 + $0x3d8] sm:$0xff]
          %v1082 = vld [vmem:[#allocation3 + $0x3e0] sm:$0xff]
          %v1083 = vld [vmem:[#allocation3 + $0x3e8] sm:$0xff]
          %v1084 = vld [vmem:[#allocation3 + $0x3f0] sm:$0xff]
          %v1085 = vld [vmem:[#allocation3 + $0x3f8] sm:$0xff]
          %v1086 = vld [vmem:[#allocation3 + $0x400] sm:$0xff]
          %v1087 = vld [vmem:[#allocation3 + $0x408] sm:$0xff]
          %v1088 = vld [vmem:[#allocation3 + $0x410] sm:$0xff]
          %v1089 = vld [vmem:[#allocation3 + $0x418] sm:$0xff]
          %v1090 = vld [vmem:[#allocation3 + $0x420] sm:$0xff]
          %v1091 = vld [vmem:[#allocation3 + $0x428] sm:$0xff]
          %v1092 = vld [vmem:[#allocation3 + $0x430] sm:$0xff]
          %v1093 = vld [vmem:[#allocation3 + $0x438] sm:$0xff]
          %v1094 = vld [vmem:[#allocation3 + $0x440] sm:$0xff]
          %v1095 = vld [vmem:[#allocation3 + $0x448] sm:$0xff]
          %v1096 = vld [vmem:[#allocation3 + $0x450] sm:$0xff]
          %v1097 = vld [vmem:[#allocation3 + $0x458] sm:$0xff]
          %v1098 = vld [vmem:[#allocation3 + $0x460] sm:$0xff]
          %v1099 = vld [vmem:[#allocation3 + $0x468] sm:$0xff]
          %v1100 = vld [vmem:[#allocation3 + $0x470] sm:$0xff]
          %v1101 = vld [vmem:[#allocation3 + $0x478] sm:$0xff]
          %v1102 = vld [vmem:[#allocation3 + $0x480] sm:$0xff]
          %v1103 = vld [vmem:[#allocation3 + $0x488] sm:$0xff]
          %v1104 = vld [vmem:[#allocation3 + $0x490] sm:$0xff]
          %v1105 = vld [vmem:[#allocation3 + $0x498] sm:$0xff]
          %v1106 = vld [vmem:[#allocation3 + $0x4a0] sm:$0xff]
          %v1107 = vld [vmem:[#allocation3 + $0x4a8] sm:$0xff]
          %v1108 = vld [vmem:[#allocation3 + $0x4b0] sm:$0xff]
          %v1109 = vld [vmem:[#allocation3 + $0x4b8] sm:$0xff]
          %v1110 = vld [vmem:[#allocation3 + $0x4c0] sm:$0xff]
          %v1111 = vld [vmem:[#allocation3 + $0x4c8] sm:$0xff]
          %v1112 = vld [vmem:[#allocation3 + $0x4d0] sm:$0xff]
          %v1113 = vld [vmem:[#allocation3 + $0x4d8] sm:$0xff]
          %v1114 = vld [vmem:[#allocation3 + $0x4e0] sm:$0xff]
          %v1115 = vld [vmem:[#allocation3 + $0x4e8] sm:$0xff]
          %v1116 = vld [vmem:[#allocation3 + $0x4f0] sm:$0xff]
          %v1117 = vld [vmem:[#allocation3 + $0x4f8] sm:$0xff]
          %v1118 = vld [vmem:[#allocation3 + $0x500] sm:$0xff]
          %v1119 = vld [vmem:[#allocation3 + $0x508] sm:$0xff]
          %v1120 = vld [vmem:[#allocation3 + $0x510] sm:$0xff]
          %v1121 = vld [vmem:[#allocation3 + $0x518] sm:$0xff]
          %v1122 = vld [vmem:[#allocation3 + $0x520] sm:$0xff]
          %v1123 = vld [vmem:[#allocation3 + $0x528] sm:$0xff]
          %v1124 = vld [vmem:[#allocation3 + $0x530] sm:$0xff]
          %v1125 = vld [vmem:[#allocation3 + $0x538] sm:$0xff]
          %v1126 = vld [vmem:[#allocation3 + $0x540] sm:$0xff]
          %v1127 = vld [vmem:[#allocation3 + $0x548] sm:$0xff]
          %v1128 = vld [vmem:[#allocation3 + $0x550] sm:$0xff]
          %v1129 = vld [vmem:[#allocation3 + $0x558] sm:$0xff]
          %v1130 = vld [vmem:[#allocation3 + $0x560] sm:$0xff]
          %v1131 = vld [vmem:[#allocation3 + $0x568] sm:$0xff]
          %v1132 = vld [vmem:[#allocation3 + $0x570] sm:$0xff]
          %v1133 = vld [vmem:[#allocation3 + $0x578] sm:$0xff]
          %v1134 = vld [vmem:[#allocation3 + $0x580] sm:$0xff]
          %v1135 = vld [vmem:[#allocation3 + $0x588] sm:$0xff]
          %v1136 = vld [vmem:[#allocation3 + $0x590] sm:$0xff]
          %v1137 = vld [vmem:[#allocation3 + $0x598] sm:$0xff]
          %v1138 = vld [vmem:[#allocation3 + $0x5a0] sm:$0xff]
          %v1139 = vld [vmem:[#allocation3 + $0x5a8] sm:$0xff]
          %v1140 = vld [vmem:[#allocation3 + $0x5b0] sm:$0xff]
          %v1141 = vld [vmem:[#allocation3 + $0x5b8] sm:$0xff]
          %v1142 = vld [vmem:[#allocation3 + $0x5c0] sm:$0xff]
          %v1143 = vld [vmem:[#allocation3 + $0x5c8] sm:$0xff]
          %v1144 = vld [vmem:[#allocation3 + $0x5d0] sm:$0xff]
          %v1145 = vld [vmem:[#allocation3 + $0x5d8] sm:$0xff]
          %v1146 = vld [vmem:[#allocation3 + $0x5e0] sm:$0xff]
          %v1147 = vld [vmem:[#allocation3 + $0x5e8] sm:$0xff]
          %v1148 = vld [vmem:[#allocation3 + $0x5f0] sm:$0xff]
          %v1149 = vld [vmem:[#allocation3 + $0x5f8] sm:$0xff]
          %v1150 = vld [vmem:[#allocation3 + $0x600] sm:$0xff]
          %v1151 = vld [vmem:[#allocation3 + $0x608] sm:$0xff]
          %v1152 = vld [vmem:[#allocation3 + $0x610] sm:$0xff]
          %v1153 = vld [vmem:[#allocation3 + $0x618] sm:$0xff]
          %v1154 = vld [vmem:[#allocation3 + $0x620] sm:$0xff]
          %v1155 = vld [vmem:[#allocation3 + $0x628] sm:$0xff]
          %v1156 = vld [vmem:[#allocation3 + $0x630] sm:$0xff]
          %v1157 = vld [vmem:[#allocation3 + $0x638] sm:$0xff]
          %v1158 = vld [vmem:[#allocation3 + $0x640] sm:$0xff]
          %v1159 = vld [vmem:[#allocation3 + $0x648] sm:$0xff]
          %v1160 = vld [vmem:[#allocation3 + $0x650] sm:$0xff]
          %v1161 = vld [vmem:[#allocation3 + $0x658] sm:$0xff]
          %v1162 = vld [vmem:[#allocation3 + $0x660] sm:$0xff]
          %v1163 = vld [vmem:[#allocation3 + $0x668] sm:$0xff]
          %v1164 = vld [vmem:[#allocation3 + $0x670] sm:$0xff]
          %v1165 = vld [vmem:[#allocation3 + $0x678] sm:$0xff]
          %v1166 = vld [vmem:[#allocation3 + $0x680] sm:$0xff]
          %v1167 = vld [vmem:[#allocation3 + $0x688] sm:$0xff]
          %v1168 = vld [vmem:[#allocation3 + $0x690] sm:$0xff]
          %v1169 = vld [vmem:[#allocation3 + $0x698] sm:$0xff]
          %v1170 = vld [vmem:[#allocation3 + $0x6a0] sm:$0xff]
          %v1171 = vld [vmem:[#allocation3 + $0x6a8] sm:$0xff]
          %v1172 = vld [vmem:[#allocation3 + $0x6b0] sm:$0xff]
          %v1173 = vld [vmem:[#allocation3 + $0x6b8] sm:$0xff]
          %v1174 = vld [vmem:[#allocation3 + $0x6c0] sm:$0xff]
          %v1175 = vld [vmem:[#allocation3 + $0x6c8] sm:$0xff]
          %v1176 = vld [vmem:[#allocation3 + $0x6d0] sm:$0xff]
          %v1177 = vld [vmem:[#allocation3 + $0x6d8] sm:$0xff]
          %v1178 = vld [vmem:[#allocation3 + $0x6e0] sm:$0xff]
          %v1179 = vld [vmem:[#allocation3 + $0x6e8] sm:$0xff]
          %v1180 = vld [vmem:[#allocation3 + $0x6f0] sm:$0xff]
          %v1181 = vld [vmem:[#allocation3 + $0x6f8] sm:$0xff]
          %v1182 = vld [vmem:[#allocation3 + $0x700] sm:$0xff]
          %v1183 = vld [vmem:[#allocation3 + $0x708] sm:$0xff]
          %v1184 = vld [vmem:[#allocation3 + $0x710] sm:$0xff]
          %v1185 = vld [vmem:[#allocation3 + $0x718] sm:$0xff]
          %v1186 = vld [vmem:[#allocation3 + $0x720] sm:$0xff]
          %v1187 = vld [vmem:[#allocation3 + $0x728] sm:$0xff]
          %v1188 = vld [vmem:[#allocation3 + $0x730] sm:$0xff]
          %v1189 = vld [vmem:[#allocation3 + $0x738] sm:$0xff]
          %v1190 = vld [vmem:[#allocation3 + $0x740] sm:$0xff]
          %v1191 = vld [vmem:[#allocation3 + $0x748] sm:$0xff]
          %v1192 = vld [vmem:[#allocation3 + $0x750] sm:$0xff]
          %v1193 = vld [vmem:[#allocation3 + $0x758] sm:$0xff]
          %v1194 = vld [vmem:[#allocation3 + $0x760] sm:$0xff]
          %v1195 = vld [vmem:[#allocation3 + $0x768] sm:$0xff]
          %v1196 = vld [vmem:[#allocation3 + $0x770] sm:$0xff]
          %v1197 = vld [vmem:[#allocation3 + $0x778] sm:$0xff]
          %v1198 = vld [vmem:[#allocation3 + $0x780] sm:$0xff]
          %v1199 = vld [vmem:[#allocation3 + $0x788] sm:$0xff]
          %v1200 = vld [vmem:[#allocation3 + $0x790] sm:$0xff]
          %v1201 = vld [vmem:[#allocation3 + $0x798] sm:$0xff]
          %v1202 = vld [vmem:[#allocation3 + $0x7a0] sm:$0xff]
          %v1203 = vld [vmem:[#allocation3 + $0x7a8] sm:$0xff]
          %v1204 = vld [vmem:[#allocation3 + $0x7b0] sm:$0xff]
          %v1205 = vld [vmem:[#allocation3 + $0x7b8] sm:$0xff]
          %v1206 = vld [vmem:[#allocation3 + $0x7c0] sm:$0xff]
          %v1207 = vld [vmem:[#allocation3 + $0x7c8] sm:$0xff]
          %v1208 = vld [vmem:[#allocation3 + $0x7d0] sm:$0xff]
          %v1209 = vld [vmem:[#allocation3 + $0x7d8] sm:$0xff]
          %v1210 = vld [vmem:[#allocation3 + $0x7e0] sm:$0xff]
          %v1211 = vld [vmem:[#allocation3 + $0x7e8] sm:$0xff]
          %v1212 = vld [vmem:[#allocation3 + $0x7f0] sm:$0xff]
          %v1213 = vld [vmem:[#allocation3 + $0x7f8] sm:$0xff]
          %v1214 = vld [vmem:[#allocation3 + $0x800] sm:$0xff]
          %v1215 = vld [vmem:[#allocation3 + $0x808] sm:$0xff]
          %v1216 = vld [vmem:[#allocation3 + $0x810] sm:$0xff]
          %v1217 = vld [vmem:[#allocation3 + $0x818] sm:$0xff]
          %v1218 = vld [vmem:[#allocation3 + $0x820] sm:$0xff]
          %v1219 = vld [vmem:[#allocation3 + $0x828] sm:$0xff]
          %v1220 = vld [vmem:[#allocation3 + $0x830] sm:$0xff]
          %v1221 = vld [vmem:[#allocation3 + $0x838] sm:$0xff]
          %v1222 = vld [vmem:[#allocation3 + $0x840] sm:$0xff]
          %v1223 = vld [vmem:[#allocation3 + $0x848] sm:$0xff]
          %v1224 = vld [vmem:[#allocation3 + $0x850] sm:$0xff]
          %v1225 = vld [vmem:[#allocation3 + $0x858] sm:$0xff]
          %v1226 = vld [vmem:[#allocation3 + $0x860] sm:$0xff]
          %v1227 = vld [vmem:[#allocation3 + $0x868] sm:$0xff]
          %v1228 = vld [vmem:[#allocation3 + $0x870] sm:$0xff]
          %v1229 = vld [vmem:[#allocation3 + $0x878] sm:$0xff]
          %v1230 = vld [vmem:[#allocation3 + $0x880] sm:$0xff]
          %v1231 = vld [vmem:[#allocation3 + $0x888] sm:$0xff]
          %v1232 = vld [vmem:[#allocation3 + $0x890] sm:$0xff]
          %v1233 = vld [vmem:[#allocation3 + $0x898] sm:$0xff]
          %v1234 = vld [vmem:[#allocation3 + $0x8a0] sm:$0xff]
          %v1235 = vld [vmem:[#allocation3 + $0x8a8] sm:$0xff]
          %v1236 = vld [vmem:[#allocation3 + $0x8b0] sm:$0xff]
          %v1237 = vld [vmem:[#allocation3 + $0x8b8] sm:$0xff]
          %v1238 = vld [vmem:[#allocation3 + $0x8c0] sm:$0xff]
          %v1239 = vld [vmem:[#allocation3 + $0x8c8] sm:$0xff]
          %v1240 = vld [vmem:[#allocation3 + $0x8d0] sm:$0xff]
          %v1241 = vld [vmem:[#allocation3 + $0x8d8] sm:$0xff]
          %v1242 = vld [vmem:[#allocation3 + $0x8e0] sm:$0xff]
          %v1243 = vld [vmem:[#allocation3 + $0x8e8] sm:$0xff]
          %v1244 = vld [vmem:[#allocation3 + $0x8f0] sm:$0xff]
          %v1245 = vld [vmem:[#allocation3 + $0x8f8] sm:$0xff]
          %v1246 = vld [vmem:[#allocation3 + $0x900] sm:$0xff]
          %v1247 = vld [vmem:[#allocation3 + $0x908] sm:$0xff]
          %v1248 = vld [vmem:[#allocation3 + $0x910] sm:$0xff]
          %v1249 = vld [vmem:[#allocation3 + $0x918] sm:$0xff]
          %v1250 = vld [vmem:[#allocation3 + $0x920] sm:$0xff]
          %v1251 = vld [vmem:[#allocation3 + $0x928] sm:$0xff]
          %v1252 = vld [vmem:[#allocation3 + $0x930] sm:$0xff]
          %v1253 = vld [vmem:[#allocation3 + $0x938] sm:$0xff]
          %v1254 = vld [vmem:[#allocation3 + $0x940] sm:$0xff]
          %v1255 = vld [vmem:[#allocation3 + $0x948] sm:$0xff]
          %v1256 = vld [vmem:[#allocation3 + $0x950] sm:$0xff]
          %v1257 = vld [vmem:[#allocation3 + $0x958] sm:$0xff]
          %v1258 = vld [vmem:[#allocation3 + $0x960] sm:$0xff]
          %v1259 = vld [vmem:[#allocation3 + $0x968] sm:$0xff]
          %v1260 = vld [vmem:[#allocation3 + $0x970] sm:$0xff]
          %v1261 = vld [vmem:[#allocation3 + $0x978] sm:$0xff]
          %v1262 = vld [vmem:[#allocation3 + $0x980] sm:$0xff]
          %v1263 = vld [vmem:[#allocation3 + $0x988] sm:$0xff]
          %v1264 = vld [vmem:[#allocation3 + $0x990] sm:$0xff]
          %v1265 = vld [vmem:[#allocation3 + $0x998] sm:$0xff]
          %v1266 = vld [vmem:[#allocation3 + $0x9a0] sm:$0xff]
          %v1267 = vld [vmem:[#allocation3 + $0x9a8] sm:$0xff]
          %v1268 = vld [vmem:[#allocation3 + $0x9b0] sm:$0xff]
          %v1269 = vld [vmem:[#allocation3 + $0x9b8] sm:$0xff]
          %v1270 = vld [vmem:[#allocation3 + $0x9c0] sm:$0xff]
          %v1271 = vld [vmem:[#allocation3 + $0x9c8] sm:$0xff]
          %v1272 = vld [vmem:[#allocation3 + $0x9d0] sm:$0xff]
          %v1273 = vld [vmem:[#allocation3 + $0x9d8] sm:$0xff]
          %v1274 = vld [vmem:[#allocation3 + $0x9e0] sm:$0xff]
          %v1275 = vld [vmem:[#allocation3 + $0x9e8] sm:$0xff]
          %v1276 = vld [vmem:[#allocation3 + $0x9f0] sm:$0xff]
          %v1277 = vld [vmem:[#allocation3 + $0x9f8] sm:$0xff]
          %v1278 = vld [vmem:[#allocation3 + $0xa00] sm:$0xff]
          %v1279 = vld [vmem:[#allocation3 + $0xa08] sm:$0xff]
          %v1280 = vld [vmem:[#allocation3 + $0xa10] sm:$0xff]
          %v1281 = vld [vmem:[#allocation3 + $0xa18] sm:$0xff]
          %v1282 = vld [vmem:[#allocation3 + $0xa20] sm:$0xff]
          %v1283 = vld [vmem:[#allocation3 + $0xa28] sm:$0xff]
          %v1284 = vld [vmem:[#allocation3 + $0xa30] sm:$0xff]
          %v1285 = vld [vmem:[#allocation3 + $0xa38] sm:$0xff]
          %v1286 = vld [vmem:[#allocation3 + $0xa40] sm:$0xff]
          %v1287 = vld [vmem:[#allocation3 + $0xa48] sm:$0xff]
          %v1288 = vld [vmem:[#allocation3 + $0xa50] sm:$0xff]
          %v1289 = vld [vmem:[#allocation3 + $0xa58] sm:$0xff]
          %v1290 = vld [vmem:[#allocation3 + $0xa60] sm:$0xff]
          %v1291 = vld [vmem:[#allocation3 + $0xa68] sm:$0xff]
          %v1292 = vld [vmem:[#allocation3 + $0xa70] sm:$0xff]
          %v1293 = vld [vmem:[#allocation3 + $0xa78] sm:$0xff]
          %v1294 = vld [vmem:[#allocation3 + $0xa80] sm:$0xff]
          %v1295 = vld [vmem:[#allocation3 + $0xa88] sm:$0xff]
          %v1296 = vld [vmem:[#allocation3 + $0xa90] sm:$0xff]
          %v1297 = vld [vmem:[#allocation3 + $0xa98] sm:$0xff]
          %v1298 = vld [vmem:[#allocation3 + $0xaa0] sm:$0xff]
          %v1299 = vld [vmem:[#allocation3 + $0xaa8] sm:$0xff]
          %v1300 = vld [vmem:[#allocation3 + $0xab0] sm:$0xff]
          %v1301 = vld [vmem:[#allocation3 + $0xab8] sm:$0xff]
          %v1302 = vld [vmem:[#allocation3 + $0xac0] sm:$0xff]
          %v1303 = vld [vmem:[#allocation3 + $0xac8] sm:$0xff]
          %v1304 = vld [vmem:[#allocation3 + $0xad0] sm:$0xff]
          %v1305 = vld [vmem:[#allocation3 + $0xad8] sm:$0xff]
          %v1306 = vld [vmem:[#allocation3 + $0xae0] sm:$0xff]
          %v1307 = vld [vmem:[#allocation3 + $0xae8] sm:$0xff]
          %v1308 = vld [vmem:[#allocation3 + $0xaf0] sm:$0xff]
          %v1309 = vld [vmem:[#allocation3 + $0xaf8] sm:$0xff]
          %v1310 = vld [vmem:[#allocation3 + $0xb00] sm:$0xff]
          %v1311 = vld [vmem:[#allocation3 + $0xb08] sm:$0xff]
          %v1312 = vld [vmem:[#allocation3 + $0xb10] sm:$0xff]
          %v1313 = vld [vmem:[#allocation3 + $0xb18] sm:$0xff]
          %v1314 = vld [vmem:[#allocation3 + $0xb20] sm:$0xff]
          %v1315 = vld [vmem:[#allocation3 + $0xb28] sm:$0xff]
          %v1316 = vld [vmem:[#allocation3 + $0xb30] sm:$0xff]
          %v1317 = vld [vmem:[#allocation3 + $0xb38] sm:$0xff]
          %v1318 = vld [vmem:[#allocation3 + $0xb40] sm:$0xff]
          %v1319 = vld [vmem:[#allocation3 + $0xb48] sm:$0xff]
          %v1320 = vld [vmem:[#allocation3 + $0xb50] sm:$0xff]
          %v1321 = vld [vmem:[#allocation3 + $0xb58] sm:$0xff]
          %v1322 = vld [vmem:[#allocation3 + $0xb60] sm:$0xff]
          %v1323 = vld [vmem:[#allocation3 + $0xb68] sm:$0xff]
          %v1324 = vld [vmem:[#allocation3 + $0xb70] sm:$0xff]
          %v1325 = vld [vmem:[#allocation3 + $0xb78] sm:$0xff]
          %v1326 = vld [vmem:[#allocation3 + $0xb80] sm:$0xff]
          %v1327 = vld [vmem:[#allocation3 + $0xb88] sm:$0xff]
          %v1328 = vld [vmem:[#allocation3 + $0xb90] sm:$0xff]
          %v1329 = vld [vmem:[#allocation3 + $0xb98] sm:$0xff]
          %v1330 = vld [vmem:[#allocation3 + $0xba0] sm:$0xff]
          %v1331 = vld [vmem:[#allocation3 + $0xba8] sm:$0xff]
          %v1332 = vld [vmem:[#allocation3 + $0xbb0] sm:$0xff]
          %v1333 = vld [vmem:[#allocation3 + $0xbb8] sm:$0xff]
          %v1334 = vld [vmem:[#allocation3 + $0xbc0] sm:$0xff]
          %v1335 = vld [vmem:[#allocation3 + $0xbc8] sm:$0xff]
          %v1336 = vld [vmem:[#allocation3 + $0xbd0] sm:$0xff]
          %v1337 = vld [vmem:[#allocation3 + $0xbd8] sm:$0xff]
          %v1338 = vld [vmem:[#allocation3 + $0xbe0] sm:$0xff]
          %v1339 = vld [vmem:[#allocation3 + $0xbe8] sm:$0xff]
          %v1340 = vld [vmem:[#allocation3 + $0xbf0] sm:$0xff]
          %v1341 = vld [vmem:[#allocation3 + $0xbf8] sm:$0xff]
          %v1342 = vld [vmem:[#allocation3 + $0xc00] sm:$0xff]
          %v1343 = vld [vmem:[#allocation3 + $0xc08] sm:$0xff]
          %v1344 = vld [vmem:[#allocation3 + $0xc10] sm:$0xff]
          %v1345 = vld [vmem:[#allocation3 + $0xc18] sm:$0xff]
          %v1346 = vld [vmem:[#allocation3 + $0xc20] sm:$0xff]
          %v1347 = vld [vmem:[#allocation3 + $0xc28] sm:$0xff]
          %v1348 = vld [vmem:[#allocation3 + $0xc30] sm:$0xff]
          %v1349 = vld [vmem:[#allocation3 + $0xc38] sm:$0xff]
          %v1350 = vld [vmem:[#allocation3 + $0xc40] sm:$0xff]
          %v1351 = vld [vmem:[#allocation3 + $0xc48] sm:$0xff]
          %v1352 = vld [vmem:[#allocation3 + $0xc50] sm:$0xff]
          %v1353 = vld [vmem:[#allocation3 + $0xc58] sm:$0xff]
          %v1354 = vld [vmem:[#allocation3 + $0xc60] sm:$0xff]
          %v1355 = vld [vmem:[#allocation3 + $0xc68] sm:$0xff]
          %v1356 = vld [vmem:[#allocation3 + $0xc70] sm:$0xff]
          %v1357 = vld [vmem:[#allocation3 + $0xc78] sm:$0xff]
          %v1358 = vld [vmem:[#allocation3 + $0xc80] sm:$0xff]
          %v1359 = vld [vmem:[#allocation3 + $0xc88] sm:$0xff]
          %v1360 = vld [vmem:[#allocation3 + $0xc90] sm:$0xff]
          %v1361 = vld [vmem:[#allocation3 + $0xc98] sm:$0xff]
          %v1362 = vld [vmem:[#allocation3 + $0xca0] sm:$0xff]
          %v1363 = vld [vmem:[#allocation3 + $0xca8] sm:$0xff]
          %v1364 = vld [vmem:[#allocation3 + $0xcb0] sm:$0xff]
          %v1365 = vld [vmem:[#allocation3 + $0xcb8] sm:$0xff]
          %v1366 = vld [vmem:[#allocation3 + $0xcc0] sm:$0xff]
          %v1367 = vld [vmem:[#allocation3 + $0xcc8] sm:$0xff]
          %v1368 = vld [vmem:[#allocation3 + $0xcd0] sm:$0xff]
          %v1369 = vld [vmem:[#allocation3 + $0xcd8] sm:$0xff]
          %v1370 = vld [vmem:[#allocation3 + $0xce0] sm:$0xff]
          %v1371 = vld [vmem:[#allocation3 + $0xce8] sm:$0xff]
          %v1372 = vld [vmem:[#allocation3 + $0xcf0] sm:$0xff]
          %v1373 = vld [vmem:[#allocation3 + $0xcf8] sm:$0xff]
          %v1374 = vld [vmem:[#allocation3 + $0xd00] sm:$0xff]
          %v1375 = vld [vmem:[#allocation3 + $0xd08] sm:$0xff]
          %v1376 = vld [vmem:[#allocation3 + $0xd10] sm:$0xff]
          %v1377 = vld [vmem:[#allocation3 + $0xd18] sm:$0xff]
          %v1378 = vld [vmem:[#allocation3 + $0xd20] sm:$0xff]
          %v1379 = vld [vmem:[#allocation3 + $0xd28] sm:$0xff]
          %v1380 = vld [vmem:[#allocation3 + $0xd30] sm:$0xff]
          %v1381 = vld [vmem:[#allocation3 + $0xd38] sm:$0xff]
          %v1382 = vld [vmem:[#allocation3 + $0xd40] sm:$0xff]
          %v1383 = vld [vmem:[#allocation3 + $0xd48] sm:$0xff]
          %v1384 = vld [vmem:[#allocation3 + $0xd50] sm:$0xff]
          %v1385 = vld [vmem:[#allocation3 + $0xd58] sm:$0xff]
          %v1386 = vld [vmem:[#allocation3 + $0xd60] sm:$0xff]
          %v1387 = vld [vmem:[#allocation3 + $0xd68] sm:$0xff]
          %v1388 = vld [vmem:[#allocation3 + $0xd70] sm:$0xff]
          %v1389 = vld [vmem:[#allocation3 + $0xd78] sm:$0xff]
          %v1390 = vld [vmem:[#allocation3 + $0xd80] sm:$0xff]
          %v1391 = vld [vmem:[#allocation3 + $0xd88] sm:$0xff]
          %v1392 = vld [vmem:[#allocation3 + $0xd90] sm:$0xff]
          %v1393 = vld [vmem:[#allocation3 + $0xd98] sm:$0xff]
          %v1394 = vld [vmem:[#allocation3 + $0xda0] sm:$0xff]
          %v1395 = vld [vmem:[#allocation3 + $0xda8] sm:$0xff]
          %v1396 = vld [vmem:[#allocation3 + $0xdb0] sm:$0xff]
          %v1397 = vld [vmem:[#allocation3 + $0xdb8] sm:$0xff]
          %v1398 = vld [vmem:[#allocation3 + $0xdc0] sm:$0xff]
          %v1399 = vld [vmem:[#allocation3 + $0xdc8] sm:$0xff]
          %v1400 = vld [vmem:[#allocation3 + $0xdd0] sm:$0xff]
          %v1401 = vld [vmem:[#allocation3 + $0xdd8] sm:$0xff]
          %v1402 = vld [vmem:[#allocation3 + $0xde0] sm:$0xff]
          %v1403 = vld [vmem:[#allocation3 + $0xde8] sm:$0xff]
          %v1404 = vld [vmem:[#allocation3 + $0xdf0] sm:$0xff]
          %v1405 = vld [vmem:[#allocation3 + $0xdf8] sm:$0xff]
          %v1406 = vld [vmem:[#allocation3 + $0xe00] sm:$0xff]
          %v1407 = vld [vmem:[#allocation3 + $0xe08] sm:$0xff]
          %v1408 = vld [vmem:[#allocation3 + $0xe10] sm:$0xff]
          %v1409 = vld [vmem:[#allocation3 + $0xe18] sm:$0xff]
          %v1410 = vld [vmem:[#allocation3 + $0xe20] sm:$0xff]
          %v1411 = vld [vmem:[#allocation3 + $0xe28] sm:$0xff]
          %v1412 = vld [vmem:[#allocation3 + $0xe30] sm:$0xff]
          %v1413 = vld [vmem:[#allocation3 + $0xe38] sm:$0xff]
          %v1414 = vld [vmem:[#allocation3 + $0xe40] sm:$0xff]
          %v1415 = vld [vmem:[#allocation3 + $0xe48] sm:$0xff]
          %v1416 = vld [vmem:[#allocation3 + $0xe50] sm:$0xff]
          %v1417 = vld [vmem:[#allocation3 + $0xe58] sm:$0xff]
          %v1418 = vld [vmem:[#allocation3 + $0xe60] sm:$0xff]
          %v1419 = vld [vmem:[#allocation3 + $0xe68] sm:$0xff]
          %v1420 = vld [vmem:[#allocation3 + $0xe70] sm:$0xff]
          %v1421 = vld [vmem:[#allocation3 + $0xe78] sm:$0xff]
          %v1422 = vld [vmem:[#allocation3 + $0xe80] sm:$0xff]
          %v1423 = vld [vmem:[#allocation3 + $0xe88] sm:$0xff]
          %v1424 = vld [vmem:[#allocation3 + $0xe90] sm:$0xff]
          %v1425 = vld [vmem:[#allocation3 + $0xe98] sm:$0xff]
          %v1426 = vld [vmem:[#allocation3 + $0xea0] sm:$0xff]
          %v1427 = vld [vmem:[#allocation3 + $0xea8] sm:$0xff]
          %v1428 = vld [vmem:[#allocation3 + $0xeb0] sm:$0xff]
          %v1429 = vld [vmem:[#allocation3 + $0xeb8] sm:$0xff]
          %v1430 = vld [vmem:[#allocation3 + $0xec0] sm:$0xff]
          %v1431 = vld [vmem:[#allocation3 + $0xec8] sm:$0xff]
          %v1432 = vld [vmem:[#allocation3 + $0xed0] sm:$0xff]
          %v1433 = vld [vmem:[#allocation3 + $0xed8] sm:$0xff]
          %v1434 = vld [vmem:[#allocation3 + $0xee0] sm:$0xff]
          %v1435 = vld [vmem:[#allocation3 + $0xee8] sm:$0xff]
          %v1436 = vld [vmem:[#allocation3 + $0xef0] sm:$0xff]
          %v1437 = vld [vmem:[#allocation3 + $0xef8] sm:$0xff]
          %v1438 = vld [vmem:[#allocation3 + $0xf00] sm:$0xff]
          %v1439 = vld [vmem:[#allocation3 + $0xf08] sm:$0xff]
          %v1440 = vld [vmem:[#allocation3 + $0xf10] sm:$0xff]
          %v1441 = vld [vmem:[#allocation3 + $0xf18] sm:$0xff]
          %v1442 = vld [vmem:[#allocation3 + $0xf20] sm:$0xff]
          %v1443 = vld [vmem:[#allocation3 + $0xf28] sm:$0xff]
          %v1444 = vld [vmem:[#allocation3 + $0xf30] sm:$0xff]
          %v1445 = vld [vmem:[#allocation3 + $0xf38] sm:$0xff]
          %v1446 = vld [vmem:[#allocation3 + $0xf40] sm:$0xff]
          %v1447 = vld [vmem:[#allocation3 + $0xf48] sm:$0xff]
          %v1448 = vld [vmem:[#allocation3 + $0xf50] sm:$0xff]
          %v1449 = vld [vmem:[#allocation3 + $0xf58] sm:$0xff]
          %v1450 = vld [vmem:[#allocation3 + $0xf60] sm:$0xff]
          %v1451 = vld [vmem:[#allocation3 + $0xf68] sm:$0xff]
          %v1452 = vld [vmem:[#allocation3 + $0xf70] sm:$0xff]
          %v1453 = vld [vmem:[#allocation3 + $0xf78] sm:$0xff]
          %v1454 = vld [vmem:[#allocation3 + $0xf80] sm:$0xff]
          %v1455 = vld [vmem:[#allocation3 + $0xf88] sm:$0xff]
          %v1456 = vld [vmem:[#allocation3 + $0xf90] sm:$0xff]
          %v1457 = vld [vmem:[#allocation3 + $0xf98] sm:$0xff]
          %v1458 = vld [vmem:[#allocation3 + $0xfa0] sm:$0xff]
          %v1459 = vld [vmem:[#allocation3 + $0xfa8] sm:$0xff]
          %v1460 = vld [vmem:[#allocation3 + $0xfb0] sm:$0xff]
          %v1461 = vld [vmem:[#allocation3 + $0xfb8] sm:$0xff]
          %v1462 = vld [vmem:[#allocation3 + $0xfc0] sm:$0xff]
          %v1463 = vld [vmem:[#allocation3 + $0xfc8] sm:$0xff]
          %v1464 = vld [vmem:[#allocation3 + $0xfd0] sm:$0xff]
          %v1465 = vld [vmem:[#allocation3 + $0xfd8] sm:$0xff]
          %v1466 = vld [vmem:[#allocation3 + $0xfe0] sm:$0xff]
          %v1467 = vld [vmem:[#allocation3 + $0xfe8] sm:$0xff]
          %v1468 = vld [vmem:[#allocation3 + $0xff0] sm:$0xff]
          %v1469 = vld [vmem:[#allocation3 + $0xff8] sm:$0xff]
          %v1470 = vld [vmem:[#allocation6] sm:$0xf]
          %v1472 = vlaneseq
          %v1473 = vshrl.u32 %v1472, 7
          %v1474 = vsub.s32 0, %v1473
          %v1475 = vrot.slane %v1470, %v1474
          %v1476 = vlaneseq
          %v1477 = vshrl.u32 %v1476, 7
          %v1478 = vsub.s32 1, %v1477
          %v1479 = vrot.slane %v1470, %v1478
          %v1480 = vlaneseq
          %v1481 = vshrl.u32 %v1480, 7
          %v1482 = vsub.s32 2, %v1481
          %v1483 = vrot.slane %v1470, %v1482
          %v1484 = vlaneseq
          %v1485 = vshrl.u32 %v1484, 7
          %v1486 = vsub.s32 3, %v1485
          %v1487 = vrot.slane %v1470, %v1486
          %1492 = vmatprep.subr.mxu0 %v959
          %1493 = vmatpush1.msra.mxu0 %v958
          %1494 = vmatprep.subr.mxu0 %v963
          %1495 = vmatpush1.msra.mxu0 %v962
          %1496 = vmatprep.subr.mxu0 %v967
          %1497 = vmatpush1.msra.mxu0 %v966
          %1498 = vmatprep.subr.mxu0 %v971
          %1499 = vmatpush1.msra.mxu0 %v970
          %1500 = vmatprep.subr.mxu0 %v975
          %1501 = vmatpush1.msra.mxu0 %v974
          %1502 = vmatprep.subr.mxu0 %v979
          %1503 = vmatpush1.msra.mxu0 %v978
          %1504 = vmatprep.subr.mxu0 %v983
          %1505 = vmatpush1.msra.mxu0 %v982
          %1506 = vmatprep.subr.mxu0 %v987
          %1507 = vmatpush1.msra.mxu0 %v986
          %1508 = vmatprep.subr.mxu0 %v991
          %1509 = vmatpush1.msra.mxu0 %v990
          %1510 = vmatprep.subr.mxu0 %v995
          %1511 = vmatpush1.msra.mxu0 %v994
          %1512 = vmatprep.subr.mxu0 %v999
          %1513 = vmatpush1.msra.mxu0 %v998
          %1514 = vmatprep.subr.mxu0 %v1003
          %1515 = vmatpush1.msra.mxu0 %v1002
          %1516 = vmatprep.subr.mxu0 %v1007
          %1517 = vmatpush1.msra.mxu0 %v1006
          %1518 = vmatprep.subr.mxu0 %v1011
          %1519 = vmatpush1.msra.mxu0 %v1010
          %1520 = vmatprep.subr.mxu0 %v1015
          %1521 = vmatpush1.msra.mxu0 %v1014
          %1522 = vmatprep.subr.mxu0 %v1019
          %1523 = vmatpush1.msra.mxu0 %v1018
          %1524 = vmatprep.subr.mxu0 %v1023
          %1525 = vmatpush1.msra.mxu0 %v1022
          %1526 = vmatprep.subr.mxu0 %v1027
          %1527 = vmatpush1.msra.mxu0 %v1026
          %1528 = vmatprep.subr.mxu0 %v1031
          %1529 = vmatpush1.msra.mxu0 %v1030
          %1530 = vmatprep.subr.mxu0 %v1035
          %1531 = vmatpush1.msra.mxu0 %v1034
          %1532 = vmatprep.subr.mxu0 %v1039
          %1533 = vmatpush1.msra.mxu0 %v1038
          %1534 = vmatprep.subr.mxu0 %v1043
          %1535 = vmatpush1.msra.mxu0 %v1042
          %1536 = vmatprep.subr.mxu0 %v1047
          %1537 = vmatpush1.msra.mxu0 %v1046
          %1538 = vmatprep.subr.mxu0 %v1051
          %1539 = vmatpush1.msra.mxu0 %v1050
          %1540 = vmatprep.subr.mxu0 %v1055
          %1541 = vmatpush1.msra.mxu0 %v1054
          %1542 = vmatprep.subr.mxu0 %v1059
          %1543 = vmatpush1.msra.mxu0 %v1058
          %1544 = vmatprep.subr.mxu0 %v1063
          %1545 = vmatpush1.msra.mxu0 %v1062
          %1546 = vmatprep.subr.mxu0 %v1067
          %1547 = vmatpush1.msra.mxu0 %v1066
          %1548 = vmatprep.subr.mxu0 %v1071
          %1549 = vmatpush1.msra.mxu0 %v1070
          %1550 = vmatprep.subr.mxu0 %v1075
          %1551 = vmatpush1.msra.mxu0 %v1074
          %1552 = vmatprep.subr.mxu0 %v1079
          %1553 = vmatpush1.msra.mxu0 %v1078
          %1554 = vmatprep.subr.mxu0 %v1083
          %1555 = vmatpush1.msra.mxu0 %v1082
          %1556 = vmatprep.mubr.f32.mxu0 %v921
          %1557 = vmatmul.mubr.f32.gmra.mrb[0].mxu0 %v915
          %v1558 = vpop.f32.mrb[0].mxu0
          %v1559 = vadd.f32 %v1475, %v1558
          %v1560 = vpop.f32.mrb[0].mxu0
          %v1561 = vadd.f32 %v1479, %v1560
          %1562 = vdwg.mxu0
          %1563 = vmatprep.subr.mxu0 %v1087
          %1564 = vmatpush1.msra.mxu0 %v1086
          %1565 = vmatprep.subr.mxu0 %v1091
          %1566 = vmatpush1.msra.mxu0 %v1090
          %1567 = vmatprep.subr.mxu0 %v1095
          %1568 = vmatpush1.msra.mxu0 %v1094
          %1569 = vmatprep.subr.mxu0 %v1099
          %1570 = vmatpush1.msra.mxu0 %v1098
          %1571 = vmatprep.subr.mxu0 %v1103
          %1572 = vmatpush1.msra.mxu0 %v1102
          %1573 = vmatprep.subr.mxu0 %v1107
          %1574 = vmatpush1.msra.mxu0 %v1106
          %1575 = vmatprep.subr.mxu0 %v1111
          %1576 = vmatpush1.msra.mxu0 %v1110
          %1577 = vmatprep.subr.mxu0 %v1115
          %1578 = vmatpush1.msra.mxu0 %v1114
          %1579 = vmatprep.subr.mxu0 %v1119
          %1580 = vmatpush1.msra.mxu0 %v1118
          %1581 = vmatprep.subr.mxu0 %v1123
          %1582 = vmatpush1.msra.mxu0 %v1122
          %1583 = vmatprep.subr.mxu0 %v1127
          %1584 = vmatpush1.msra.mxu0 %v1126
          %1585 = vmatprep.subr.mxu0 %v1131
          %1586 = vmatpush1.msra.mxu0 %v1130
          %1587 = vmatprep.subr.mxu0 %v1135
          %1588 = vmatpush1.msra.mxu0 %v1134
          %1589 = vmatprep.subr.mxu0 %v1139
          %1590 = vmatpush1.msra.mxu0 %v1138
          %1591 = vmatprep.subr.mxu0 %v1143
          %1592 = vmatpush1.msra.mxu0 %v1142
          %1593 = vmatprep.subr.mxu0 %v1147
          %1594 = vmatpush1.msra.mxu0 %v1146
          %1595 = vmatprep.subr.mxu0 %v1151
          %1596 = vmatpush1.msra.mxu0 %v1150
          %1597 = vmatprep.subr.mxu0 %v1155
          %1598 = vmatpush1.msra.mxu0 %v1154
          %1599 = vmatprep.subr.mxu0 %v1159
          %1600 = vmatpush1.msra.mxu0 %v1158
          %1601 = vmatprep.subr.mxu0 %v1163
          %1602 = vmatpush1.msra.mxu0 %v1162
          %1603 = vmatprep.subr.mxu0 %v1167
          %1604 = vmatpush1.msra.mxu0 %v1166
          %1605 = vmatprep.subr.mxu0 %v1171
          %1606 = vmatpush1.msra.mxu0 %v1170
          %1607 = vmatprep.subr.mxu0 %v1175
          %1608 = vmatpush1.msra.mxu0 %v1174
          %1609 = vmatprep.subr.mxu0 %v1179
          %1610 = vmatpush1.msra.mxu0 %v1178
          %1611 = vmatprep.subr.mxu0 %v1183
          %1612 = vmatpush1.msra.mxu0 %v1182
          %1613 = vmatprep.subr.mxu0 %v1187
          %1614 = vmatpush1.msra.mxu0 %v1186
          %1615 = vmatprep.subr.mxu0 %v1191
          %1616 = vmatpush1.msra.mxu0 %v1190
          %1617 = vmatprep.subr.mxu0 %v1195
          %1618 = vmatpush1.msra.mxu0 %v1194
          %1619 = vmatprep.subr.mxu0 %v1199
          %1620 = vmatpush1.msra.mxu0 %v1198
          %1621 = vmatprep.subr.mxu0 %v1203
          %1622 = vmatpush1.msra.mxu0 %v1202
          %1623 = vmatprep.subr.mxu0 %v1207
          %1624 = vmatpush1.msra.mxu0 %v1206
          %1625 = vmatprep.subr.mxu0 %v1211
          %1626 = vmatpush1.msra.mxu0 %v1210
          %1627 = vmatprep.mubr.f32.mxu0 %v933
          %1628 = vmatmul.mubr.f32.gmra.mrb[0].mxu0 %v927
          %v1629 = vpop.f32.mrb[0].mxu0
          %v1630 = vadd.f32 %v1559, %v1629
          %v1631 = vpop.f32.mrb[0].mxu0
          %v1632 = vadd.f32 %v1561, %v1631
          %1633 = vdwg.mxu0
          %1634 = vmatprep.subr.mxu0 %v1215
          %1635 = vmatpush1.msra.mxu0 %v1214
          %1636 = vmatprep.subr.mxu0 %v1219
          %1637 = vmatpush1.msra.mxu0 %v1218
          %1638 = vmatprep.subr.mxu0 %v1223
          %1639 = vmatpush1.msra.mxu0 %v1222
          %1640 = vmatprep.subr.mxu0 %v1227
          %1641 = vmatpush1.msra.mxu0 %v1226
          %1642 = vmatprep.subr.mxu0 %v1231
          %1643 = vmatpush1.msra.mxu0 %v1230
          %1644 = vmatprep.subr.mxu0 %v1235
          %1645 = vmatpush1.msra.mxu0 %v1234
          %1646 = vmatprep.subr.mxu0 %v1239
          %1647 = vmatpush1.msra.mxu0 %v1238
          %1648 = vmatprep.subr.mxu0 %v1243
          %1649 = vmatpush1.msra.mxu0 %v1242
          %1650 = vmatprep.subr.mxu0 %v1247
          %1651 = vmatpush1.msra.mxu0 %v1246
          %1652 = vmatprep.subr.mxu0 %v1251
          %1653 = vmatpush1.msra.mxu0 %v1250
          %1654 = vmatprep.subr.mxu0 %v1255
          %1655 = vmatpush1.msra.mxu0 %v1254
          %1656 = vmatprep.subr.mxu0 %v1259
          %1657 = vmatpush1.msra.mxu0 %v1258
          %1658 = vmatprep.subr.mxu0 %v1263
          %1659 = vmatpush1.msra.mxu0 %v1262
          %1660 = vmatprep.subr.mxu0 %v1267
          %1661 = vmatpush1.msra.mxu0 %v1266
          %1662 = vmatprep.subr.mxu0 %v1271
          %1663 = vmatpush1.msra.mxu0 %v1270
          %1664 = vmatprep.subr.mxu0 %v1275
          %1665 = vmatpush1.msra.mxu0 %v1274
          %1666 = vmatprep.subr.mxu0 %v1279
          %1667 = vmatpush1.msra.mxu0 %v1278
          %1668 = vmatprep.subr.mxu0 %v1283
          %1669 = vmatpush1.msra.mxu0 %v1282
          %1670 = vmatprep.subr.mxu0 %v1287
          %1671 = vmatpush1.msra.mxu0 %v1286
          %1672 = vmatprep.subr.mxu0 %v1291
          %1673 = vmatpush1.msra.mxu0 %v1290
          %1674 = vmatprep.subr.mxu0 %v1295
          %1675 = vmatpush1.msra.mxu0 %v1294
          %1676 = vmatprep.subr.mxu0 %v1299
          %1677 = vmatpush1.msra.mxu0 %v1298
          %1678 = vmatprep.subr.mxu0 %v1303
          %1679 = vmatpush1.msra.mxu0 %v1302
          %1680 = vmatprep.subr.mxu0 %v1307
          %1681 = vmatpush1.msra.mxu0 %v1306
          %1682 = vmatprep.subr.mxu0 %v1311
          %1683 = vmatpush1.msra.mxu0 %v1310
          %1684 = vmatprep.subr.mxu0 %v1315
          %1685 = vmatpush1.msra.mxu0 %v1314
          %1686 = vmatprep.subr.mxu0 %v1319
          %1687 = vmatpush1.msra.mxu0 %v1318
          %1688 = vmatprep.subr.mxu0 %v1323
          %1689 = vmatpush1.msra.mxu0 %v1322
          %1690 = vmatprep.subr.mxu0 %v1327
          %1691 = vmatpush1.msra.mxu0 %v1326
          %1692 = vmatprep.subr.mxu0 %v1331
          %1693 = vmatpush1.msra.mxu0 %v1330
          %1694 = vmatprep.subr.mxu0 %v1335
          %1695 = vmatpush1.msra.mxu0 %v1334
          %1696 = vmatprep.subr.mxu0 %v1339
          %1697 = vmatpush1.msra.mxu0 %v1338
          %1698 = vmatprep.mubr.f32.mxu0 %v945
          %1699 = vmatmul.mubr.f32.gmra.mrb[0].mxu0 %v939
          %v1700 = vpop.f32.mrb[0].mxu0
          %v1701 = vadd.f32 %v1630, %v1700
          %v1702 = vpop.f32.mrb[0].mxu0
          %v1703 = vadd.f32 %v1632, %v1702
          %1704 = vdwg.mxu0
          %1705 = vmatprep.subr.mxu0 %v1343
          %1706 = vmatpush1.msra.mxu0 %v1342
          %1707 = vmatprep.subr.mxu0 %v1347
          %1708 = vmatpush1.msra.mxu0 %v1346
          %1709 = vmatprep.subr.mxu0 %v1351
          %1710 = vmatpush1.msra.mxu0 %v1350
          %1711 = vmatprep.subr.mxu0 %v1355
          %1712 = vmatpush1.msra.mxu0 %v1354
          %1713 = vmatprep.subr.mxu0 %v1359
          %1714 = vmatpush1.msra.mxu0 %v1358
          %1715 = vmatprep.subr.mxu0 %v1363
          %1716 = vmatpush1.msra.mxu0 %v1362
          %1717 = vmatprep.subr.mxu0 %v1367
          %1718 = vmatpush1.msra.mxu0 %v1366
          %1719 = vmatprep.subr.mxu0 %v1371
          %1720 = vmatpush1.msra.mxu0 %v1370
          %1721 = vmatprep.subr.mxu0 %v1375
          %1722 = vmatpush1.msra.mxu0 %v1374
          %1723 = vmatprep.subr.mxu0 %v1379
          %1724 = vmatpush1.msra.mxu0 %v1378
          %1725 = vmatprep.subr.mxu0 %v1383
          %1726 = vmatpush1.msra.mxu0 %v1382
          %1727 = vmatprep.subr.mxu0 %v1387
          %1728 = vmatpush1.msra.mxu0 %v1386
          %1729 = vmatprep.subr.mxu0 %v1391
          %1730 = vmatpush1.msra.mxu0 %v1390
          %1731 = vmatprep.subr.mxu0 %v1395
          %1732 = vmatpush1.msra.mxu0 %v1394
          %1733 = vmatprep.subr.mxu0 %v1399
          %1734 = vmatpush1.msra.mxu0 %v1398
          %1735 = vmatprep.subr.mxu0 %v1403
          %1736 = vmatpush1.msra.mxu0 %v1402
          %1737 = vmatprep.subr.mxu0 %v1407
          %1738 = vmatpush1.msra.mxu0 %v1406
          %1739 = vmatprep.subr.mxu0 %v1411
          %1740 = vmatpush1.msra.mxu0 %v1410
          %1741 = vmatprep.subr.mxu0 %v1415
          %1742 = vmatpush1.msra.mxu0 %v1414
          %1743 = vmatprep.subr.mxu0 %v1419
          %1744 = vmatpush1.msra.mxu0 %v1418
          %1745 = vmatprep.subr.mxu0 %v1423
          %1746 = vmatpush1.msra.mxu0 %v1422
          %1747 = vmatprep.subr.mxu0 %v1427
          %1748 = vmatpush1.msra.mxu0 %v1426
          %1749 = vmatprep.subr.mxu0 %v1431
          %1750 = vmatpush1.msra.mxu0 %v1430
          %1751 = vmatprep.subr.mxu0 %v1435
          %1752 = vmatpush1.msra.mxu0 %v1434
          %1753 = vmatprep.subr.mxu0 %v1439
          %1754 = vmatpush1.msra.mxu0 %v1438
          %1755 = vmatprep.subr.mxu0 %v1443
          %1756 = vmatpush1.msra.mxu0 %v1442
          %1757 = vmatprep.subr.mxu0 %v1447
          %1758 = vmatpush1.msra.mxu0 %v1446
          %1759 = vmatprep.subr.mxu0 %v1451
          %1760 = vmatpush1.msra.mxu0 %v1450
          %1761 = vmatprep.subr.mxu0 %v1455
          %1762 = vmatpush1.msra.mxu0 %v1454
          %1763 = vmatprep.subr.mxu0 %v1459
          %1764 = vmatpush1.msra.mxu0 %v1458
          %1765 = vmatprep.subr.mxu0 %v1463
          %1766 = vmatpush1.msra.mxu0 %v1462
          %1767 = vmatprep.subr.mxu0 %v1467
          %1768 = vmatpush1.msra.mxu0 %v1466
          %1769 = vmatprep.mubr.f32.mxu0 %v957
          %1770 = vmatmul.mubr.f32.gmra.mrb[0].mxu0 %v951
          %v1771 = vpop.f32.mrb[0].mxu0
          %v1772 = vadd.f32 %v1701, %v1771
          %v1773 = vpop.f32.mrb[0].mxu0
          %v1774 = vadd.f32 %v1703, %v1773
          %1775 = vdwg.mxu0
          %1776 = vmatprep.subr.mxu0 %v961
          %1777 = vmatpush1.msra.mxu0 %v960
          %1778 = vmatprep.subr.mxu0 %v965
          %1779 = vmatpush1.msra.mxu0 %v964
          %1780 = vmatprep.subr.mxu0 %v969
          %1781 = vmatpush1.msra.mxu0 %v968
          %1782 = vmatprep.subr.mxu0 %v973
          %1783 = vmatpush1.msra.mxu0 %v972
          %1784 = vmatprep.subr.mxu0 %v977
          %1785 = vmatpush1.msra.mxu0 %v976
          %1786 = vmatprep.subr.mxu0 %v981
          %1787 = vmatpush1.msra.mxu0 %v980
          %1788 = vmatprep.subr.mxu0 %v985
          %1789 = vmatpush1.msra.mxu0 %v984
          %1790 = vmatprep.subr.mxu0 %v989
          %1791 = vmatpush1.msra.mxu0 %v988
          %1792 = vmatprep.subr.mxu0 %v993
          %1793 = vmatpush1.msra.mxu0 %v992
          %1794 = vmatprep.subr.mxu0 %v997
          %1795 = vmatpush1.msra.mxu0 %v996
          %1796 = vmatprep.subr.mxu0 %v1001
          %1797 = vmatpush1.msra.mxu0 %v1000
          %1798 = vmatprep.subr.mxu0 %v1005
          %1799 = vmatpush1.msra.mxu0 %v1004
          %1800 = vmatprep.subr.mxu0 %v1009
          %1801 = vmatpush1.msra.mxu0 %v1008
          %1802 = vmatprep.subr.mxu0 %v1013
          %1803 = vmatpush1.msra.mxu0 %v1012
          %1804 = vmatprep.subr.mxu0 %v1017
          %1805 = vmatpush1.msra.mxu0 %v1016
          %1806 = vmatprep.subr.mxu0 %v1021
          %1807 = vmatpush1.msra.mxu0 %v1020
          %1808 = vmatprep.subr.mxu0 %v1025
          %1809 = vmatpush1.msra.mxu0 %v1024
          %1810 = vmatprep.subr.mxu0 %v1029
          %1811 = vmatpush1.msra.mxu0 %v1028
          %1812 = vmatprep.subr.mxu0 %v1033
          %1813 = vmatpush1.msra.mxu0 %v1032
          %1814 = vmatprep.subr.mxu0 %v1037
          %1815 = vmatpush1.msra.mxu0 %v1036
          %1816 = vmatprep.subr.mxu0 %v1041
          %1817 = vmatpush1.msra.mxu0 %v1040
          %1818 = vmatprep.subr.mxu0 %v1045
          %1819 = vmatpush1.msra.mxu0 %v1044
          %1820 = vmatprep.subr.mxu0 %v1049
          %1821 = vmatpush1.msra.mxu0 %v1048
          %1822 = vmatprep.subr.mxu0 %v1053
          %1823 = vmatpush1.msra.mxu0 %v1052
          %1824 = vmatprep.subr.mxu0 %v1057
          %1825 = vmatpush1.msra.mxu0 %v1056
          %1826 = vmatprep.subr.mxu0 %v1061
          %1827 = vmatpush1.msra.mxu0 %v1060
          %1828 = vmatprep.subr.mxu0 %v1065
          %1829 = vmatpush1.msra.mxu0 %v1064
          %1830 = vmatprep.subr.mxu0 %v1069
          %1831 = vmatpush1.msra.mxu0 %v1068
          %1832 = vmatprep.subr.mxu0 %v1073
          %1833 = vmatpush1.msra.mxu0 %v1072
          %1834 = vmatprep.subr.mxu0 %v1077
          %1835 = vmatpush1.msra.mxu0 %v1076
          %1836 = vmatprep.subr.mxu0 %v1081
          %1837 = vmatpush1.msra.mxu0 %v1080
          %1838 = vmatprep.subr.mxu0 %v1085
          %1839 = vmatpush1.msra.mxu0 %v1084
          %1840 = vmatprep.mubr.f32.mxu0 %v921
          %1841 = vmatmul.mubr.f32.gmra.mrb[0].mxu0 %v915
          %v1842 = vpop.f32.mrb[0].mxu0
          %v1843 = vadd.f32 %v1483, %v1842
          %v1844 = vpop.f32.mrb[0].mxu0
          %v1845 = vadd.f32 %v1487, %v1844
          %1846 = vdwg.mxu0
          %1847 = vmatprep.subr.mxu0 %v1089
          %1848 = vmatpush1.msra.mxu0 %v1088
          %1849 = vmatprep.subr.mxu0 %v1093
          %1850 = vmatpush1.msra.mxu0 %v1092
          %1851 = vmatprep.subr.mxu0 %v1097
          %1852 = vmatpush1.msra.mxu0 %v1096
          %1853 = vmatprep.subr.mxu0 %v1101
          %1854 = vmatpush1.msra.mxu0 %v1100
          %1855 = vmatprep.subr.mxu0 %v1105
          %1856 = vmatpush1.msra.mxu0 %v1104
          %1857 = vmatprep.subr.mxu0 %v1109
          %1858 = vmatpush1.msra.mxu0 %v1108
          %1859 = vmatprep.subr.mxu0 %v1113
          %1860 = vmatpush1.msra.mxu0 %v1112
          %1861 = vmatprep.subr.mxu0 %v1117
          %1862 = vmatpush1.msra.mxu0 %v1116
          %1863 = vmatprep.subr.mxu0 %v1121
          %1864 = vmatpush1.msra.mxu0 %v1120
          %1865 = vmatprep.subr.mxu0 %v1125
          %1866 = vmatpush1.msra.mxu0 %v1124
          %1867 = vmatprep.subr.mxu0 %v1129
          %1868 = vmatpush1.msra.mxu0 %v1128
          %1869 = vmatprep.subr.mxu0 %v1133
          %1870 = vmatpush1.msra.mxu0 %v1132
          %1871 = vmatprep.subr.mxu0 %v1137
          %1872 = vmatpush1.msra.mxu0 %v1136
          %1873 = vmatprep.subr.mxu0 %v1141
          %1874 = vmatpush1.msra.mxu0 %v1140
          %1875 = vmatprep.subr.mxu0 %v1145
          %1876 = vmatpush1.msra.mxu0 %v1144
          %1877 = vmatprep.subr.mxu0 %v1149
          %1878 = vmatpush1.msra.mxu0 %v1148
          %1879 = vmatprep.subr.mxu0 %v1153
          %1880 = vmatpush1.msra.mxu0 %v1152
          %1881 = vmatprep.subr.mxu0 %v1157
          %1882 = vmatpush1.msra.mxu0 %v1156
          %1883 = vmatprep.subr.mxu0 %v1161
          %1884 = vmatpush1.msra.mxu0 %v1160
          %1885 = vmatprep.subr.mxu0 %v1165
          %1886 = vmatpush1.msra.mxu0 %v1164
          %1887 = vmatprep.subr.mxu0 %v1169
          %1888 = vmatpush1.msra.mxu0 %v1168
          %1889 = vmatprep.subr.mxu0 %v1173
          %1890 = vmatpush1.msra.mxu0 %v1172
          %1891 = vmatprep.subr.mxu0 %v1177
          %1892 = vmatpush1.msra.mxu0 %v1176
          %1893 = vmatprep.subr.mxu0 %v1181
          %1894 = vmatpush1.msra.mxu0 %v1180
          %1895 = vmatprep.subr.mxu0 %v1185
          %1896 = vmatpush1.msra.mxu0 %v1184
          %1897 = vmatprep.subr.mxu0 %v1189
          %1898 = vmatpush1.msra.mxu0 %v1188
          %1899 = vmatprep.subr.mxu0 %v1193
          %1900 = vmatpush1.msra.mxu0 %v1192
          %1901 = vmatprep.subr.mxu0 %v1197
          %1902 = vmatpush1.msra.mxu0 %v1196
          %1903 = vmatprep.subr.mxu0 %v1201
          %1904 = vmatpush1.msra.mxu0 %v1200
          %1905 = vmatprep.subr.mxu0 %v1205
          %1906 = vmatpush1.msra.mxu0 %v1204
          %1907 = vmatprep.subr.mxu0 %v1209
          %1908 = vmatpush1.msra.mxu0 %v1208
          %1909 = vmatprep.subr.mxu0 %v1213
          %1910 = vmatpush1.msra.mxu0 %v1212
          %1911 = vmatprep.mubr.f32.mxu0 %v933
          %1912 = vmatmul.mubr.f32.gmra.mrb[0].mxu0 %v927
          %v1913 = vpop.f32.mrb[0].mxu0
          %v1914 = vadd.f32 %v1843, %v1913
          %v1915 = vpop.f32.mrb[0].mxu0
          %v1916 = vadd.f32 %v1845, %v1915
          %1917 = vdwg.mxu0
          %1918 = vmatprep.subr.mxu0 %v1217
          %1919 = vmatpush1.msra.mxu0 %v1216
          %1920 = vmatprep.subr.mxu0 %v1221
          %1921 = vmatpush1.msra.mxu0 %v1220
          %1922 = vmatprep.subr.mxu0 %v1225
          %1923 = vmatpush1.msra.mxu0 %v1224
          %1924 = vmatprep.subr.mxu0 %v1229
          %1925 = vmatpush1.msra.mxu0 %v1228
          %1926 = vmatprep.subr.mxu0 %v1233
          %1927 = vmatpush1.msra.mxu0 %v1232
          %1928 = vmatprep.subr.mxu0 %v1237
          %1929 = vmatpush1.msra.mxu0 %v1236
          %1930 = vmatprep.subr.mxu0 %v1241
          %1931 = vmatpush1.msra.mxu0 %v1240
          %1932 = vmatprep.subr.mxu0 %v1245
          %1933 = vmatpush1.msra.mxu0 %v1244
          %1934 = vmatprep.subr.mxu0 %v1249
          %1935 = vmatpush1.msra.mxu0 %v1248
          %1936 = vmatprep.subr.mxu0 %v1253
          %1937 = vmatpush1.msra.mxu0 %v1252
          %1938 = vmatprep.subr.mxu0 %v1257
          %1939 = vmatpush1.msra.mxu0 %v1256
          %1940 = vmatprep.subr.mxu0 %v1261
          %1941 = vmatpush1.msra.mxu0 %v1260
          %1942 = vmatprep.subr.mxu0 %v1265
          %1943 = vmatpush1.msra.mxu0 %v1264
          %1944 = vmatprep.subr.mxu0 %v1269
          %1945 = vmatpush1.msra.mxu0 %v1268
          %1946 = vmatprep.subr.mxu0 %v1273
          %1947 = vmatpush1.msra.mxu0 %v1272
          %1948 = vmatprep.subr.mxu0 %v1277
          %1949 = vmatpush1.msra.mxu0 %v1276
          %1950 = vmatprep.subr.mxu0 %v1281
          %1951 = vmatpush1.msra.mxu0 %v1280
          %1952 = vmatprep.subr.mxu0 %v1285
          %1953 = vmatpush1.msra.mxu0 %v1284
          %1954 = vmatprep.subr.mxu0 %v1289
          %1955 = vmatpush1.msra.mxu0 %v1288
          %1956 = vmatprep.subr.mxu0 %v1293
          %1957 = vmatpush1.msra.mxu0 %v1292
          %1958 = vmatprep.subr.mxu0 %v1297
          %1959 = vmatpush1.msra.mxu0 %v1296
          %1960 = vmatprep.subr.mxu0 %v1301
          %1961 = vmatpush1.msra.mxu0 %v1300
          %1962 = vmatprep.subr.mxu0 %v1305
          %1963 = vmatpush1.msra.mxu0 %v1304
          %1964 = vmatprep.subr.mxu0 %v1309
          %1965 = vmatpush1.msra.mxu0 %v1308
          %1966 = vmatprep.subr.mxu0 %v1313
          %1967 = vmatpush1.msra.mxu0 %v1312
          %1968 = vmatprep.subr.mxu0 %v1317
          %1969 = vmatpush1.msra.mxu0 %v1316
          %1970 = vmatprep.subr.mxu0 %v1321
          %1971 = vmatpush1.msra.mxu0 %v1320
          %1972 = vmatprep.subr.mxu0 %v1325
          %1973 = vmatpush1.msra.mxu0 %v1324
          %1974 = vmatprep.subr.mxu0 %v1329
          %1975 = vmatpush1.msra.mxu0 %v1328
          %1976 = vmatprep.subr.mxu0 %v1333
          %1977 = vmatpush1.msra.mxu0 %v1332
          %1978 = vmatprep.subr.mxu0 %v1337
          %1979 = vmatpush1.msra.mxu0 %v1336
          %1980 = vmatprep.subr.mxu0 %v1341
          %1981 = vmatpush1.msra.mxu0 %v1340
          %1982 = vmatprep.mubr.f32.mxu0 %v945
          %1983 = vmatmul.mubr.f32.gmra.mrb[0].mxu0 %v939
          %v1984 = vpop.f32.mrb[0].mxu0
          %v1985 = vadd.f32 %v1914, %v1984
          %v1986 = vpop.f32.mrb[0].mxu0
          %v1987 = vadd.f32 %v1916, %v1986
          %1988 = vdwg.mxu0
          %1989 = vmatprep.subr.mxu0 %v1345
          %1990 = vmatpush1.msra.mxu0 %v1344
          %1991 = vmatprep.subr.mxu0 %v1349
          %1992 = vmatpush1.msra.mxu0 %v1348
          %1993 = vmatprep.subr.mxu0 %v1353
          %1994 = vmatpush1.msra.mxu0 %v1352
          %1995 = vmatprep.subr.mxu0 %v1357
          %1996 = vmatpush1.msra.mxu0 %v1356
          %1997 = vmatprep.subr.mxu0 %v1361
          %1998 = vmatpush1.msra.mxu0 %v1360
          %1999 = vmatprep.subr.mxu0 %v1365
          %2000 = vmatpush1.msra.mxu0 %v1364
          %2001 = vmatprep.subr.mxu0 %v1369
          %2002 = vmatpush1.msra.mxu0 %v1368
          %2003 = vmatprep.subr.mxu0 %v1373
          %2004 = vmatpush1.msra.mxu0 %v1372
          %2005 = vmatprep.subr.mxu0 %v1377
          %2006 = vmatpush1.msra.mxu0 %v1376
          %2007 = vmatprep.subr.mxu0 %v1381
          %2008 = vmatpush1.msra.mxu0 %v1380
          %2009 = vmatprep.subr.mxu0 %v1385
          %2010 = vmatpush1.msra.mxu0 %v1384
          %2011 = vmatprep.subr.mxu0 %v1389
          %2012 = vmatpush1.msra.mxu0 %v1388
          %2013 = vmatprep.subr.mxu0 %v1393
          %2014 = vmatpush1.msra.mxu0 %v1392
          %2015 = vmatprep.subr.mxu0 %v1397
          %2016 = vmatpush1.msra.mxu0 %v1396
          %2017 = vmatprep.subr.mxu0 %v1401
          %2018 = vmatpush1.msra.mxu0 %v1400
          %2019 = vmatprep.subr.mxu0 %v1405
          %2020 = vmatpush1.msra.mxu0 %v1404
          %2021 = vmatprep.subr.mxu0 %v1409
          %2022 = vmatpush1.msra.mxu0 %v1408
          %2023 = vmatprep.subr.mxu0 %v1413
          %2024 = vmatpush1.msra.mxu0 %v1412
          %2025 = vmatprep.subr.mxu0 %v1417
          %2026 = vmatpush1.msra.mxu0 %v1416
          %2027 = vmatprep.subr.mxu0 %v1421
          %2028 = vmatpush1.msra.mxu0 %v1420
          %2029 = vmatprep.subr.mxu0 %v1425
          %2030 = vmatpush1.msra.mxu0 %v1424
          %2031 = vmatprep.subr.mxu0 %v1429
          %2032 = vmatpush1.msra.mxu0 %v1428
          %2033 = vmatprep.subr.mxu0 %v1433
          %2034 = vmatpush1.msra.mxu0 %v1432
          %2035 = vmatprep.subr.mxu0 %v1437
          %2036 = vmatpush1.msra.mxu0 %v1436
          %2037 = vmatprep.subr.mxu0 %v1441
          %2038 = vmatpush1.msra.mxu0 %v1440
          %2039 = vmatprep.subr.mxu0 %v1445
          %2040 = vmatpush1.msra.mxu0 %v1444
          %2041 = vmatprep.subr.mxu0 %v1449
          %2042 = vmatpush1.msra.mxu0 %v1448
          %2043 = vmatprep.subr.mxu0 %v1453
          %2044 = vmatpush1.msra.mxu0 %v1452
          %2045 = vmatprep.subr.mxu0 %v1457
          %2046 = vmatpush1.msra.mxu0 %v1456
          %2047 = vmatprep.subr.mxu0 %v1461
          %2048 = vmatpush1.msra.mxu0 %v1460
          %2049 = vmatprep.subr.mxu0 %v1465
          %2050 = vmatpush1.msra.mxu0 %v1464
          %2051 = vmatprep.subr.mxu0 %v1469
          %2052 = vmatpush1.msra.mxu0 %v1468
          %2053 = vmatprep.mubr.f32.mxu0 %v957
          %2054 = vmatmul.mubr.f32.gmra.mrb[0].mxu0 %v951
          %v2055 = vpop.f32.mrb[0].mxu0
          %v2056 = vadd.f32 %v1985, %v2055
          %v2057 = vpop.f32.mrb[0].mxu0
          %v2058 = vadd.f32 %v1987, %v2057
          %2059 = vdwg.mxu0
          %v2060 = vld [vmem:[#allocation8] sm:$0xff]
          %v2061 = vld [vmem:[#allocation8 + $0x8] sm:$0xff]
          %v2062 = vld [vmem:[#allocation8 + $0x10] sm:$0xff]
          %v2063 = vld [vmem:[#allocation8 + $0x18] sm:$0xff]
          %v2064 = vld [vmem:[#allocation8 + $0x20] sm:$0xff]
          %v2065 = vld [vmem:[#allocation8 + $0x28] sm:$0xff]
          %v2066 = vld [vmem:[#allocation8 + $0x30] sm:$0xff]
          %v2067 = vld [vmem:[#allocation8 + $0x38] sm:$0xff]
          %v2068 = vld [vmem:[#allocation8 + $0x40] sm:$0xff]
          %v2069 = vld [vmem:[#allocation8 + $0x48] sm:$0xff]
          %v2070 = vld [vmem:[#allocation8 + $0x50] sm:$0xff]
          %v2071 = vld [vmem:[#allocation8 + $0x58] sm:$0xff]
          %v2072 = vld [vmem:[#allocation8 + $0x60] sm:$0xff]
          %v2073 = vld [vmem:[#allocation8 + $0x68] sm:$0xff]
          %v2074 = vld [vmem:[#allocation8 + $0x70] sm:$0xff]
          %v2075 = vld [vmem:[#allocation8 + $0x78] sm:$0xff]
          %v2076 = vld [vmem:[#allocation8 + $0x80] sm:$0xff]
          %v2077 = vld [vmem:[#allocation8 + $0x88] sm:$0xff]
          %v2078 = vld [vmem:[#allocation8 + $0x90] sm:$0xff]
          %v2079 = vld [vmem:[#allocation8 + $0x98] sm:$0xff]
          %v2080 = vld [vmem:[#allocation8 + $0xa0] sm:$0xff]
          %v2081 = vld [vmem:[#allocation8 + $0xa8] sm:$0xff]
          %v2082 = vld [vmem:[#allocation8 + $0xb0] sm:$0xff]
          %v2083 = vld [vmem:[#allocation8 + $0xb8] sm:$0xff]
          %v2084 = vld [vmem:[#allocation8 + $0xc0] sm:$0xff]
          %v2085 = vld [vmem:[#allocation8 + $0xc8] sm:$0xff]
          %v2086 = vld [vmem:[#allocation8 + $0xd0] sm:$0xff]
          %v2087 = vld [vmem:[#allocation8 + $0xd8] sm:$0xff]
          %v2088 = vld [vmem:[#allocation8 + $0xe0] sm:$0xff]
          %v2089 = vld [vmem:[#allocation8 + $0xe8] sm:$0xff]
          %v2090 = vld [vmem:[#allocation8 + $0xf0] sm:$0xff]
          %v2091 = vld [vmem:[#allocation8 + $0xf8] sm:$0xff]
          %v2092 = vld [vmem:[#allocation8 + $0x100] sm:$0xff]
          %v2093 = vld [vmem:[#allocation8 + $0x108] sm:$0xff]
          %v2094 = vld [vmem:[#allocation8 + $0x110] sm:$0xff]
          %v2095 = vld [vmem:[#allocation8 + $0x118] sm:$0xff]
          %v2096 = vld [vmem:[#allocation8 + $0x120] sm:$0xff]
          %v2097 = vld [vmem:[#allocation8 + $0x128] sm:$0xff]
          %v2098 = vld [vmem:[#allocation8 + $0x130] sm:$0xff]
          %v2099 = vld [vmem:[#allocation8 + $0x138] sm:$0xff]
          %v2100 = vld [vmem:[#allocation8 + $0x140] sm:$0xff]
          %v2101 = vld [vmem:[#allocation8 + $0x148] sm:$0xff]
          %v2102 = vld [vmem:[#allocation8 + $0x150] sm:$0xff]
          %v2103 = vld [vmem:[#allocation8 + $0x158] sm:$0xff]
          %v2104 = vld [vmem:[#allocation8 + $0x160] sm:$0xff]
          %v2105 = vld [vmem:[#allocation8 + $0x168] sm:$0xff]
          %v2106 = vld [vmem:[#allocation8 + $0x170] sm:$0xff]
          %v2107 = vld [vmem:[#allocation8 + $0x178] sm:$0xff]
          %v2108 = vld [vmem:[#allocation8 + $0x180] sm:$0xff]
          %v2109 = vld [vmem:[#allocation8 + $0x188] sm:$0xff]
          %v2110 = vld [vmem:[#allocation8 + $0x190] sm:$0xff]
          %v2111 = vld [vmem:[#allocation8 + $0x198] sm:$0xff]
          %v2112 = vld [vmem:[#allocation8 + $0x1a0] sm:$0xff]
          %v2113 = vld [vmem:[#allocation8 + $0x1a8] sm:$0xff]
          %v2114 = vld [vmem:[#allocation8 + $0x1b0] sm:$0xff]
          %v2115 = vld [vmem:[#allocation8 + $0x1b8] sm:$0xff]
          %v2116 = vld [vmem:[#allocation8 + $0x1c0] sm:$0xff]
          %v2117 = vld [vmem:[#allocation8 + $0x1c8] sm:$0xff]
          %v2118 = vld [vmem:[#allocation8 + $0x1d0] sm:$0xff]
          %v2119 = vld [vmem:[#allocation8 + $0x1d8] sm:$0xff]
          %v2120 = vld [vmem:[#allocation8 + $0x1e0] sm:$0xff]
          %v2121 = vld [vmem:[#allocation8 + $0x1e8] sm:$0xff]
          %v2122 = vld [vmem:[#allocation8 + $0x1f0] sm:$0xff]
          %v2123 = vld [vmem:[#allocation8 + $0x1f8] sm:$0xff]
          %v2124 = vld [vmem:[#allocation8 + $0x200] sm:$0xff]
          %v2125 = vld [vmem:[#allocation8 + $0x208] sm:$0xff]
          %v2126 = vld [vmem:[#allocation8 + $0x210] sm:$0xff]
          %v2127 = vld [vmem:[#allocation8 + $0x218] sm:$0xff]
          %v2128 = vld [vmem:[#allocation8 + $0x220] sm:$0xff]
          %v2129 = vld [vmem:[#allocation8 + $0x228] sm:$0xff]
          %v2130 = vld [vmem:[#allocation8 + $0x230] sm:$0xff]
          %v2131 = vld [vmem:[#allocation8 + $0x238] sm:$0xff]
          %v2132 = vld [vmem:[#allocation8 + $0x240] sm:$0xff]
          %v2133 = vld [vmem:[#allocation8 + $0x248] sm:$0xff]
          %v2134 = vld [vmem:[#allocation8 + $0x250] sm:$0xff]
          %v2135 = vld [vmem:[#allocation8 + $0x258] sm:$0xff]
          %v2136 = vld [vmem:[#allocation8 + $0x260] sm:$0xff]
          %v2137 = vld [vmem:[#allocation8 + $0x268] sm:$0xff]
          %v2138 = vld [vmem:[#allocation8 + $0x270] sm:$0xff]
          %v2139 = vld [vmem:[#allocation8 + $0x278] sm:$0xff]
          %v2140 = vld [vmem:[#allocation8 + $0x280] sm:$0xff]
          %v2141 = vld [vmem:[#allocation8 + $0x288] sm:$0xff]
          %v2142 = vld [vmem:[#allocation8 + $0x290] sm:$0xff]
          %v2143 = vld [vmem:[#allocation8 + $0x298] sm:$0xff]
          %v2144 = vld [vmem:[#allocation8 + $0x2a0] sm:$0xff]
          %v2145 = vld [vmem:[#allocation8 + $0x2a8] sm:$0xff]
          %v2146 = vld [vmem:[#allocation8 + $0x2b0] sm:$0xff]
          %v2147 = vld [vmem:[#allocation8 + $0x2b8] sm:$0xff]
          %v2148 = vld [vmem:[#allocation8 + $0x2c0] sm:$0xff]
          %v2149 = vld [vmem:[#allocation8 + $0x2c8] sm:$0xff]
          %v2150 = vld [vmem:[#allocation8 + $0x2d0] sm:$0xff]
          %v2151 = vld [vmem:[#allocation8 + $0x2d8] sm:$0xff]
          %v2152 = vld [vmem:[#allocation8 + $0x2e0] sm:$0xff]
          %v2153 = vld [vmem:[#allocation8 + $0x2e8] sm:$0xff]
          %v2154 = vld [vmem:[#allocation8 + $0x2f0] sm:$0xff]
          %v2155 = vld [vmem:[#allocation8 + $0x2f8] sm:$0xff]
          %v2156 = vld [vmem:[#allocation8 + $0x300] sm:$0xff]
          %v2157 = vld [vmem:[#allocation8 + $0x308] sm:$0xff]
          %v2158 = vld [vmem:[#allocation8 + $0x310] sm:$0xff]
          %v2159 = vld [vmem:[#allocation8 + $0x318] sm:$0xff]
          %v2160 = vld [vmem:[#allocation8 + $0x320] sm:$0xff]
          %v2161 = vld [vmem:[#allocation8 + $0x328] sm:$0xff]
          %v2162 = vld [vmem:[#allocation8 + $0x330] sm:$0xff]
          %v2163 = vld [vmem:[#allocation8 + $0x338] sm:$0xff]
          %v2164 = vld [vmem:[#allocation8 + $0x340] sm:$0xff]
          %v2165 = vld [vmem:[#allocation8 + $0x348] sm:$0xff]
          %v2166 = vld [vmem:[#allocation8 + $0x350] sm:$0xff]
          %v2167 = vld [vmem:[#allocation8 + $0x358] sm:$0xff]
          %v2168 = vld [vmem:[#allocation8 + $0x360] sm:$0xff]
          %v2169 = vld [vmem:[#allocation8 + $0x368] sm:$0xff]
          %v2170 = vld [vmem:[#allocation8 + $0x370] sm:$0xff]
          %v2171 = vld [vmem:[#allocation8 + $0x378] sm:$0xff]
          %v2172 = vld [vmem:[#allocation8 + $0x380] sm:$0xff]
          %v2173 = vld [vmem:[#allocation8 + $0x388] sm:$0xff]
          %v2174 = vld [vmem:[#allocation8 + $0x390] sm:$0xff]
          %v2175 = vld [vmem:[#allocation8 + $0x398] sm:$0xff]
          %v2176 = vld [vmem:[#allocation8 + $0x3a0] sm:$0xff]
          %v2177 = vld [vmem:[#allocation8 + $0x3a8] sm:$0xff]
          %v2178 = vld [vmem:[#allocation8 + $0x3b0] sm:$0xff]
          %v2179 = vld [vmem:[#allocation8 + $0x3b8] sm:$0xff]
          %v2180 = vld [vmem:[#allocation8 + $0x3c0] sm:$0xff]
          %v2181 = vld [vmem:[#allocation8 + $0x3c8] sm:$0xff]
          %v2182 = vld [vmem:[#allocation8 + $0x3d0] sm:$0xff]
          %v2183 = vld [vmem:[#allocation8 + $0x3d8] sm:$0xff]
          %v2184 = vld [vmem:[#allocation8 + $0x3e0] sm:$0xff]
          %v2185 = vld [vmem:[#allocation8 + $0x3e8] sm:$0xff]
          %v2186 = vld [vmem:[#allocation8 + $0x3f0] sm:$0xff]
          %v2187 = vld [vmem:[#allocation8 + $0x3f8] sm:$0xff]
          %v2188 = vld [vmem:[#allocation9] sm:$0x3]
          %v2190 = vlaneseq
          %v2191 = vshrl.u32 %v2190, 7
          %v2192 = vsub.s32 0, %v2191
          %v2193 = vrot.slane %v2188, %v2192
          %v2194 = vlaneseq
          %v2195 = vshrl.u32 %v2194, 7
          %v2196 = vsub.s32 1, %v2195
          %v2197 = vrot.slane %v2188, %v2196
          %2200 = vmatprep.subr.mxu0 %v2061
          %2201 = vmatpush1.msra.mxu0 %v2060
          %2202 = vmatprep.subr.mxu0 %v2063
          %2203 = vmatpush1.msra.mxu0 %v2062
          %2204 = vmatprep.subr.mxu0 %v2065
          %2205 = vmatpush1.msra.mxu0 %v2064
          %2206 = vmatprep.subr.mxu0 %v2067
          %2207 = vmatpush1.msra.mxu0 %v2066
          %2208 = vmatprep.subr.mxu0 %v2069
          %2209 = vmatpush1.msra.mxu0 %v2068
          %2210 = vmatprep.subr.mxu0 %v2071
          %2211 = vmatpush1.msra.mxu0 %v2070
          %2212 = vmatprep.subr.mxu0 %v2073
          %2213 = vmatpush1.msra.mxu0 %v2072
          %2214 = vmatprep.subr.mxu0 %v2075
          %2215 = vmatpush1.msra.mxu0 %v2074
          %2216 = vmatprep.subr.mxu0 %v2077
          %2217 = vmatpush1.msra.mxu0 %v2076
          %2218 = vmatprep.subr.mxu0 %v2079
          %2219 = vmatpush1.msra.mxu0 %v2078
          %2220 = vmatprep.subr.mxu0 %v2081
          %2221 = vmatpush1.msra.mxu0 %v2080
          %2222 = vmatprep.subr.mxu0 %v2083
          %2223 = vmatpush1.msra.mxu0 %v2082
          %2224 = vmatprep.subr.mxu0 %v2085
          %2225 = vmatpush1.msra.mxu0 %v2084
          %2226 = vmatprep.subr.mxu0 %v2087
          %2227 = vmatpush1.msra.mxu0 %v2086
          %2228 = vmatprep.subr.mxu0 %v2089
          %2229 = vmatpush1.msra.mxu0 %v2088
          %2230 = vmatprep.subr.mxu0 %v2091
          %2231 = vmatpush1.msra.mxu0 %v2090
          %2232 = vmatprep.subr.mxu0 %v2093
          %2233 = vmatpush1.msra.mxu0 %v2092
          %2234 = vmatprep.subr.mxu0 %v2095
          %2235 = vmatpush1.msra.mxu0 %v2094
          %2236 = vmatprep.subr.mxu0 %v2097
          %2237 = vmatpush1.msra.mxu0 %v2096
          %2238 = vmatprep.subr.mxu0 %v2099
          %2239 = vmatpush1.msra.mxu0 %v2098
          %2240 = vmatprep.subr.mxu0 %v2101
          %2241 = vmatpush1.msra.mxu0 %v2100
          %2242 = vmatprep.subr.mxu0 %v2103
          %2243 = vmatpush1.msra.mxu0 %v2102
          %2244 = vmatprep.subr.mxu0 %v2105
          %2245 = vmatpush1.msra.mxu0 %v2104
          %2246 = vmatprep.subr.mxu0 %v2107
          %2247 = vmatpush1.msra.mxu0 %v2106
          %2248 = vmatprep.subr.mxu0 %v2109
          %2249 = vmatpush1.msra.mxu0 %v2108
          %2250 = vmatprep.subr.mxu0 %v2111
          %2251 = vmatpush1.msra.mxu0 %v2110
          %2252 = vmatprep.subr.mxu0 %v2113
          %2253 = vmatpush1.msra.mxu0 %v2112
          %2254 = vmatprep.subr.mxu0 %v2115
          %2255 = vmatpush1.msra.mxu0 %v2114
          %2256 = vmatprep.subr.mxu0 %v2117
          %2257 = vmatpush1.msra.mxu0 %v2116
          %2258 = vmatprep.subr.mxu0 %v2119
          %2259 = vmatpush1.msra.mxu0 %v2118
          %2260 = vmatprep.subr.mxu0 %v2121
          %2261 = vmatpush1.msra.mxu0 %v2120
          %2262 = vmatprep.subr.mxu0 %v2123
          %2263 = vmatpush1.msra.mxu0 %v2122
          %2264 = vmatprep.mubr.f32.mxu0 %v1774
          %2265 = vmatmul.mubr.f32.gmra.mrb[0].mxu0 %v1772
          %v2266 = vpop.f32.mrb[0].mxu0
          %v2267 = vadd.f32 %v2193, %v2266
          %v2268 = vpop.f32.mrb[0].mxu0
          %v2269 = vadd.f32 %v2197, %v2268
          %2270 = vdwg.mxu0
          %2271 = vmatprep.subr.mxu0 %v2125
          %2272 = vmatpush1.msra.mxu0 %v2124
          %2273 = vmatprep.subr.mxu0 %v2127
          %2274 = vmatpush1.msra.mxu0 %v2126
          %2275 = vmatprep.subr.mxu0 %v2129
          %2276 = vmatpush1.msra.mxu0 %v2128
          %2277 = vmatprep.subr.mxu0 %v2131
          %2278 = vmatpush1.msra.mxu0 %v2130
          %2279 = vmatprep.subr.mxu0 %v2133
          %2280 = vmatpush1.msra.mxu0 %v2132
          %2281 = vmatprep.subr.mxu0 %v2135
          %2282 = vmatpush1.msra.mxu0 %v2134
          %2283 = vmatprep.subr.mxu0 %v2137
          %2284 = vmatpush1.msra.mxu0 %v2136
          %2285 = vmatprep.subr.mxu0 %v2139
          %2286 = vmatpush1.msra.mxu0 %v2138
          %2287 = vmatprep.subr.mxu0 %v2141
          %2288 = vmatpush1.msra.mxu0 %v2140
          %2289 = vmatprep.subr.mxu0 %v2143
          %2290 = vmatpush1.msra.mxu0 %v2142
          %2291 = vmatprep.subr.mxu0 %v2145
          %2292 = vmatpush1.msra.mxu0 %v2144
          %2293 = vmatprep.subr.mxu0 %v2147
          %2294 = vmatpush1.msra.mxu0 %v2146
          %2295 = vmatprep.subr.mxu0 %v2149
          %2296 = vmatpush1.msra.mxu0 %v2148
          %2297 = vmatprep.subr.mxu0 %v2151
          %2298 = vmatpush1.msra.mxu0 %v2150
          %2299 = vmatprep.subr.mxu0 %v2153
          %2300 = vmatpush1.msra.mxu0 %v2152
          %2301 = vmatprep.subr.mxu0 %v2155
          %2302 = vmatpush1.msra.mxu0 %v2154
          %2303 = vmatprep.subr.mxu0 %v2157
          %2304 = vmatpush1.msra.mxu0 %v2156
          %2305 = vmatprep.subr.mxu0 %v2159
          %2306 = vmatpush1.msra.mxu0 %v2158
          %2307 = vmatprep.subr.mxu0 %v2161
          %2308 = vmatpush1.msra.mxu0 %v2160
          %2309 = vmatprep.subr.mxu0 %v2163
          %2310 = vmatpush1.msra.mxu0 %v2162
          %2311 = vmatprep.subr.mxu0 %v2165
          %2312 = vmatpush1.msra.mxu0 %v2164
          %2313 = vmatprep.subr.mxu0 %v2167
          %2314 = vmatpush1.msra.mxu0 %v2166
          %2315 = vmatprep.subr.mxu0 %v2169
          %2316 = vmatpush1.msra.mxu0 %v2168
          %2317 = vmatprep.subr.mxu0 %v2171
          %2318 = vmatpush1.msra.mxu0 %v2170
          %2319 = vmatprep.subr.mxu0 %v2173
          %2320 = vmatpush1.msra.mxu0 %v2172
          %2321 = vmatprep.subr.mxu0 %v2175
          %2322 = vmatpush1.msra.mxu0 %v2174
          %2323 = vmatprep.subr.mxu0 %v2177
          %2324 = vmatpush1.msra.mxu0 %v2176
          %2325 = vmatprep.subr.mxu0 %v2179
          %2326 = vmatpush1.msra.mxu0 %v2178
          %2327 = vmatprep.subr.mxu0 %v2181
          %2328 = vmatpush1.msra.mxu0 %v2180
          %2329 = vmatprep.subr.mxu0 %v2183
          %2330 = vmatpush1.msra.mxu0 %v2182
          %2331 = vmatprep.subr.mxu0 %v2185
          %2332 = vmatpush1.msra.mxu0 %v2184
          %2333 = vmatprep.subr.mxu0 %v2187
          %2334 = vmatpush1.msra.mxu0 %v2186
          %2335 = vmatprep.mubr.f32.mxu0 %v2058
          %2336 = vmatmul.mubr.f32.gmra.mrb[0].mxu0 %v2056
          %v2337 = vpop.f32.mrb[0].mxu0
          %v2338 = vadd.f32 %v2267, %v2337
          %v2339 = vpop.f32.mrb[0].mxu0
          %v2340 = vadd.f32 %v2269, %v2339
          %2341 = vdwg.mxu0
          %v2342 = vld [vmem:[%s6] sm:$0xff]
          %v2343 = vld [vmem:[%s6 + $0x8] sm:$0xff]
          %v2344 = vld [vmem:[%s6 + $0x10] sm:$0xff]
          %v2345 = vld [vmem:[%s6 + $0x18] sm:$0xff]
          %v2346 = vld [vmem:[%s6 + $0x20] sm:$0xff]
          %v2347 = vld [vmem:[%s6 + $0x28] sm:$0xff]
          %v2348 = vld [vmem:[%s6 + $0x30] sm:$0xff]
          %v2349 = vld [vmem:[%s6 + $0x38] sm:$0xff]
          %v2350 = vld [vmem:[%s6 + $0x40] sm:$0xff]
          %v2351 = vld [vmem:[%s6 + $0x48] sm:$0xff]
          %v2352 = vld [vmem:[%s6 + $0x50] sm:$0xff]
          %v2353 = vld [vmem:[%s6 + $0x58] sm:$0xff]
          %v2354 = vld [vmem:[%s6 + $0x60] sm:$0xff]
          %v2355 = vld [vmem:[%s6 + $0x68] sm:$0xff]
          %v2356 = vld [vmem:[%s6 + $0x70] sm:$0xff]
          %v2357 = vld [vmem:[%s6 + $0x78] sm:$0xff]
          %v2358 = vld [vmem:[%s6 + $0x80] sm:$0xff]
          %v2359 = vld [vmem:[%s6 + $0x88] sm:$0xff]
          %v2360 = vld [vmem:[%s6 + $0x90] sm:$0xff]
          %v2361 = vld [vmem:[%s6 + $0x98] sm:$0xff]
          %v2362 = vld [vmem:[%s6 + $0xa0] sm:$0xff]
          %v2363 = vld [vmem:[%s6 + $0xa8] sm:$0xff]
          %v2364 = vld [vmem:[%s6 + $0xb0] sm:$0xff]
          %v2365 = vld [vmem:[%s6 + $0xb8] sm:$0xff]
          %v2366 = vld [vmem:[%s6 + $0xc0] sm:$0xff]
          %v2367 = vld [vmem:[%s6 + $0xc8] sm:$0xff]
          %v2368 = vld [vmem:[%s6 + $0xd0] sm:$0xff]
          %v2369 = vld [vmem:[%s6 + $0xd8] sm:$0xff]
          %v2370 = vld [vmem:[%s6 + $0xe0] sm:$0xff]
          %v2371 = vld [vmem:[%s6 + $0xe8] sm:$0xff]
          %v2372 = vld [vmem:[%s6 + $0xf0] sm:$0xff]
          %v2373 = vld [vmem:[%s6 + $0xf8] sm:$0xff]
          %v2374 = vld [vmem:[%s7] sm:$0x1]
          %2375 = vmatprep.subr.mxu0 0.0
          %2376 = vmatpush1.msra.mxu0 %v2342
          %2377 = vmatprep.subr.mxu0 0.0
          %2378 = vmatpush1.msra.mxu0 %v2343
          %2379 = vmatprep.subr.mxu0 0.0
          %2380 = vmatpush1.msra.mxu0 %v2344
          %2381 = vmatprep.subr.mxu0 0.0
          %2382 = vmatpush1.msra.mxu0 %v2345
          %2383 = vmatprep.subr.mxu0 0.0
          %2384 = vmatpush1.msra.mxu0 %v2346
          %2385 = vmatprep.subr.mxu0 0.0
          %2386 = vmatpush1.msra.mxu0 %v2347
          %2387 = vmatprep.subr.mxu0 0.0
          %2388 = vmatpush1.msra.mxu0 %v2348
          %2389 = vmatprep.subr.mxu0 0.0
          %2390 = vmatpush1.msra.mxu0 %v2349
          %2391 = vmatprep.subr.mxu0 0.0
          %2392 = vmatpush1.msra.mxu0 %v2350
          %2393 = vmatprep.subr.mxu0 0.0
          %2394 = vmatpush1.msra.mxu0 %v2351
          %2395 = vmatprep.subr.mxu0 0.0
          %2396 = vmatpush1.msra.mxu0 %v2352
          %2397 = vmatprep.subr.mxu0 0.0
          %2398 = vmatpush1.msra.mxu0 %v2353
          %2399 = vmatprep.subr.mxu0 0.0
          %2400 = vmatpush1.msra.mxu0 %v2354
          %2401 = vmatprep.subr.mxu0 0.0
          %2402 = vmatpush1.msra.mxu0 %v2355
          %2403 = vmatprep.subr.mxu0 0.0
          %2404 = vmatpush1.msra.mxu0 %v2356
          %2405 = vmatprep.subr.mxu0 0.0
          %2406 = vmatpush1.msra.mxu0 %v2357
          %2407 = vmatprep.subr.mxu0 0.0
          %2408 = vmatpush1.msra.mxu0 %v2358
          %2409 = vmatprep.subr.mxu0 0.0
          %2410 = vmatpush1.msra.mxu0 %v2359
          %2411 = vmatprep.subr.mxu0 0.0
          %2412 = vmatpush1.msra.mxu0 %v2360
          %2413 = vmatprep.subr.mxu0 0.0
          %2414 = vmatpush1.msra.mxu0 %v2361
          %2415 = vmatprep.subr.mxu0 0.0
          %2416 = vmatpush1.msra.mxu0 %v2362
          %2417 = vmatprep.subr.mxu0 0.0
          %2418 = vmatpush1.msra.mxu0 %v2363
          %2419 = vmatprep.subr.mxu0 0.0
          %2420 = vmatpush1.msra.mxu0 %v2364
          %2421 = vmatprep.subr.mxu0 0.0
          %2422 = vmatpush1.msra.mxu0 %v2365
          %2423 = vmatprep.subr.mxu0 0.0
          %2424 = vmatpush1.msra.mxu0 %v2366
          %2425 = vmatprep.subr.mxu0 0.0
          %2426 = vmatpush1.msra.mxu0 %v2367
          %2427 = vmatprep.subr.mxu0 0.0
          %2428 = vmatpush1.msra.mxu0 %v2368
          %2429 = vmatprep.subr.mxu0 0.0
          %2430 = vmatpush1.msra.mxu0 %v2369
          %2431 = vmatprep.subr.mxu0 0.0
          %2432 = vmatpush1.msra.mxu0 %v2370
          %2433 = vmatprep.subr.mxu0 0.0
          %2434 = vmatpush1.msra.mxu0 %v2371
          %2435 = vmatprep.subr.mxu0 0.0
          %2436 = vmatpush1.msra.mxu0 %v2372
          %2437 = vmatprep.subr.mxu0 0.0
          %2438 = vmatpush1.msra.mxu0 %v2373
          %2439 = vmatprep.mubr.f32.mxu0 %v2340
          %2440 = vmatmul.mubr.f32.gmra.mrb[0].mxu0 %v2338
          %v2441 = vpop.f32.mrb[0].mxu0
          %v2442 = vadd.f32 %v2374, %v2441
          %v2443 = vpop.f32.mrb[0].mxu0
          %2444 = vdwg.mxu0
          %vm2445 = vcmask 1040384
          %v2446 = vsel %vm2445, %v2442, -inf
          %2447 = vmax.xlane.f32.xlu0 %v2446
          %v2448 = vpop.xlane.xlu0 %2447
          %v2449 = vsub.f32 %v2442, %v2448
          %v2450 = vmul.f32 %v2449, 1.442695
          %v2451 = vpow.pop %v2450
          %v2452 = vsel %vm2445, %v2451, 0.0
          %2453 = vadd.xlane.f32.xlu0 %v2452
          %v2454 = vpop.xlane.xlu0 %2453
          %v2455 = vlog2.pop %v2454
          %v2456 = vmul.f32 %v2455, 0.6931472
          %v2457 = vsub.f32 %v2449, %v2456
          %2458 = vst [vmem:[%s375] sm:$0x1] %v2457
        $region76: #{nlgat_forward.1} parent=51 // pred_fallthru
          _
        %s2459 = sand.u32 %s220, 1
        %s2460 = scalar_lea.sflag [#allocation5], %s2459
        %s2461 = sand.u32 %s220, 1
        %s2462 = scalar_lea.vmem [#allocation11], %s2461
        // Predicated region
        $region77: #{nlgat_forward.1} parent=51 // pred_check
          %p2463 = pneg %p230
        $region78: #{nlgat_forward.1} parent=51 // pred_check_branch
          %2465 = sbr.rel (%p2463) target = $region80
        $region79: #{nlgat_forward.1} parent=51 // pred_region
          %s2467 = ssub.s32 16, 16
          %2468 = vsyncadd %s2460, %s2467
          %s2469 = smul.addr %s29, 16
          %s2470 = scalar_lea.hbm %s8, %s2469
          %s2472 = sshll.u32 %s2462, 4
          %s2473 = int_to_ptr.vmem [resolvable:$true] %s2472
          %2475 = dma.vmem_to_hbm [thread:$0]  %s2473, 16, %s2470, %s2460
        $region80: #{nlgat_forward.1} parent=51 // pred_fallthru
          _
      $region52: #{nlgat_forward.1} parent=5 // pred_fallthru
        _
      %p2476 = scmp.le.s32.totalorder 2, %s20
      // Predicated region
      $region81: #{nlgat_forward.1} parent=5 // pred_check
        %p2477 = pneg %p2476
      $region82: #{nlgat_forward.1} parent=5 // pred_check_branch
        %2479 = sbr.rel (%p2477) target = $region84
      $region83: #{nlgat_forward.1} parent=5 // pred_region
        %s2480 = ssub.s32 %s20, 2
        // Predicated region
        $region85: #{nlgat_forward.1} parent=83 // pred_check
          %p2481 = pneg %p236
        $region86: #{nlgat_forward.1} parent=83 // pred_check_branch
          %2483 = sbr.rel (%p2481) target = $region88
        $region87: #{nlgat_forward.1} parent=83 // pred_region
          %s2484 = sand.u32 %s221, 1
          %s2485 = scalar_lea.sflag [#allocation5], %s2484
          %s2486 = sand.u32 %s221, 1
          %s2487 = scalar_lea.vmem [#allocation11], %s2486
          %2488 = dma.done %s2485, 16
        $region88: #{nlgat_forward.1} parent=83 // pred_fallthru
          _
      $region84: #{nlgat_forward.1} parent=5 // pred_fallthru
        _
    $region6: #{nlgat_forward.1} parent=1 // loop_footer
      %s24 = sadd.s32 1, %s20
    $region7: #{nlgat_forward.1} parent=1 // loop_footer_branch
      %19 = sbr.rel target = $region3
    $region8: #{nlgat_forward.1} parent=1 // loop_exit
      _
    %2489 = vsyncpa [#allocation4], 1
    %s2490 = scalar_lea.sflag [#allocation4], 1
    %2491 = vsyncpa %s2490, 1
    %2492 = vsyncpa [#allocation7], 1
    %2493 = vsyncpa [#allocation10], 1
    %2494 = vsyncpa [#allocation5], 1
    %s2495 = scalar_lea.sflag [#allocation5], 1
    %2496 = vsyncpa %s2495, 1

</llo_original>
